<compile_context>
chip_gen: v7x
topology: tpu7x:2x2x1
jax: 0.10.0
libtpu: 0.0.40
codegen_flags: <defaults>
</compile_context>

<pallas_src>
import functools

import jax
import jax.numpy as jnp
from jax.experimental import pallas as pl
from jax.experimental.pallas import tpu as pltpu


# ------------------------------ conv3x3 kernel ------------------------------ #

def _conv3x3_kernel(x_ref, w_ref, b_ref, o_ref, *, th, im2col, apply_relu):
    # x_ref: (1, H+2, W+2, Cin)  zero-padded input (whole image, resident), bf16
    # w_ref: (9*Cin, Cout)       tap-major 3x3 weights, bf16
    # b_ref: (1, Cout)           f32 bias
    # o_ref: (1, th, W, Cout)    output row-chunk
    _, _, W, Cout = o_ref.shape
    Cin = x_ref.shape[-1]
    i = pl.program_id(1)
    row0 = pl.multiple_of(i * th, th)
    # padded rows [row0, row0 + th + 2) cover the th output rows of this chunk
    xin = x_ref[0, pl.ds(row0, th + 2), :, :]               # (th+2, W+2, Cin)

    if im2col:
        # single K = 9*Cin MXU matmul per chunk
        parts = []
        for dy in range(3):
            for dx in range(3):
                parts.append(xin[dy:dy + th, dx:dx + W, :].reshape(th * W, Cin))
        slab = jnp.concatenate(parts, axis=-1)              # (th*W, 9*Cin)
        acc = jnp.dot(slab, w_ref[...], preferred_element_type=jnp.float32)
    else:
        # tiny-Cin path (first layer, Cin=3): 9 small dots with f32 accumulation
        acc = jnp.zeros((th * W, Cout), jnp.float32)
        for dy in range(3):
            for dx in range(3):
                patch = xin[dy:dy + th, dx:dx + W, :].reshape(th * W, Cin)
                k0 = (dy * 3 + dx) * Cin
                acc = acc + jnp.dot(patch, w_ref[k0:k0 + Cin, :],
                                    preferred_element_type=jnp.float32)

    acc = acc + b_ref[...]
    if apply_relu:
        acc = jnp.maximum(acc, 0.0)
    o_ref[0] = acc.reshape(th, W, Cout).astype(o_ref.dtype)


def conv3x3_nhwc(x_padded, w2d, b2, *, relu, out_dtype):
    # x_padded: (N, H+2, W+2, Cin) bf16; w2d: (9*Cin, Cout) bf16; b2: (1, Cout) f32
    N, Hp, Wp, Cin = x_padded.shape
    H, W = Hp - 2, Wp - 2
    Cout = w2d.shape[-1]

    # row-chunk size: aim for M = th*W ~= 128 matmul rows, th must divide H
    th = max(1, min(H, 128 // max(W, 1)))
    while H % th:
        th -= 1
    grid = (N, H // th)

    kernel = functools.partial(_conv3x3_kernel, th=th,
                               im2col=(Cin >= 64), apply_relu=relu)
    return pl.pallas_call(
        kernel,
        out_shape=jax.ShapeDtypeStruct((N, H, W, Cout), out_dtype),
        grid=grid,
        in_specs=[
            pl.BlockSpec((1, Hp, Wp, Cin), lambda n, i: (n, 0, 0, 0)),
            pl.BlockSpec((w2d.shape[0], Cout), lambda n, i: (0, 0)),
            pl.BlockSpec((1, Cout), lambda n, i: (0, 0)),
        ],
        out_specs=pl.BlockSpec((1, th, W, Cout), lambda n, i: (n, i, 0, 0)),
        compiler_params=pltpu.CompilerParams(
            dimension_semantics=("parallel", "parallel")),
    )(x_padded, w2d, b2)


# ------------------------------ maxpool kernel ------------------------------ #

def _maxpool2x2_kernel(x_ref, o_ref):
    # x_ref: (1, th, W//2, 2*C) -- W-pairs regrouped onto the lane dim (wrapper reshape)
    # o_ref: (1, th//2, W//2, C)
    C = o_ref.shape[-1]
    x = x_ref[0]                                       # (th, Wo, 2C)
    m = jnp.maximum(x[:, :, :C], x[:, :, C:])          # max over the W pair (lane halves)
    th, wo, _ = m.shape
    m = m.reshape(th // 2, 2, wo, C)                   # leading-dim split: layout-free
    o_ref[0] = jnp.maximum(m[:, 0], m[:, 1])           # max over the H pair


def maxpool2x2_nhwc(x):
    N, H, W, C = x.shape
    Ho, Wo = H // 2, W // 2
    x2 = x.reshape(N, H, Wo, 2 * C)                    # glue: row-major regroup (free)
    th = min(8, H)
    grid = (N, H // th)
    return pl.pallas_call(
        _maxpool2x2_kernel,
        out_shape=jax.ShapeDtypeStruct((N, Ho, Wo, C), x.dtype),
        grid=grid,
        in_specs=[pl.BlockSpec((1, th, Wo, 2 * C), lambda n, i: (n, i, 0, 0))],
        out_specs=pl.BlockSpec((1, th // 2, Wo, C), lambda n, i: (n, i, 0, 0)),
        compiler_params=pltpu.CompilerParams(
            dimension_semantics=("parallel", "parallel")),
    )(x2)


# ------------------------------- model wrapper ------------------------------ #

_VGG19_CFG = [64, 64, 'M', 128, 128, 'M', 256, 256, 256, 256, 'M',
              512, 512, 512, 512, 'M', 512, 512, 512, 512, 'M']


def _make_vgg19_feature_layers():
    layers, cin = [], 3
    for v in _VGG19_CFG:
        if v == 'M':
            layers.append(('pool',))
        else:
            layers.append(('conv', cin, v))
            layers.append(('relu',))
            cin = v
    return layers


class VGGFeatureExtractorPallas:
    """Pallas re-implementation of ESRGAN's VGGFeatureExtractor forward pass."""

    def __init__(self, layer='relu3_1', use_input_norm=True, key=None):
        layer_map = {'relu1_1': 2, 'relu2_1': 7, 'relu3_1': 12, 'relu4_1': 21}
        assert layer in layer_map, f"Invalid layer '{layer}' for VGGFeatureExtractor."
        all_layers = _make_vgg19_feature_layers()
        self.layers = all_layers[:layer_map[layer] + 1]
        self.use_input_norm = use_input_norm
        self.mean = jnp.array([0.485, 0.456, 0.406], jnp.float32)
        self.std = jnp.array([0.229, 0.224, 0.225], jnp.float32)

        if key is None:
            key = jax.random.PRNGKey(0)
        # Deterministic synthetic weights in the PyTorch conv layout (Cout, Cin, 3, 3).
        self.params = []          # f32 originals (pure-JAX reference uses these)
        self.kernel_params = []   # pre-layouted (9*Cin, Cout) bf16 + (1, Cout) f32 bias
        first_conv = True
        for lyr in self.layers:
            if lyr[0] == 'conv':
                _, cin, cout = lyr
                key, kw, kb = jax.random.split(key, 3)
                scale = (2.0 / (cin * 9)) ** 0.5
                w = jax.random.normal(kw, (cout, cin, 3, 3), jnp.float32) * scale
                b = jax.random.normal(kb, (cout,), jnp.float32) * 0.01
                self.params.append((w, b))
                w_hwio = jnp.transpose(w, (2, 3, 1, 0))           # (3, 3, Cin, Cout)
                if first_conv and self.use_input_norm:
                    # fold the 1/std of the input normalization into conv1 (exact)
                    w_hwio = w_hwio / self.std.reshape(1, 1, cin, 1)
                w2d = w_hwio.reshape(9 * cin, cout).astype(jnp.bfloat16)
                b2 = b.reshape(1, cout).astype(jnp.float32)
                self.kernel_params.append((w2d, b2))
                first_conv = False
            else:
                self.params.append(None)
                self.kernel_params.append(None)

    def __call__(self, x_nchw):
        # x_nchw: (N, 3, H, W) float32, same convention as the PyTorch module.
        x = jnp.transpose(x_nchw, (0, 2, 3, 1))                   # glue -> NHWC
        if self.use_input_norm:
            # -mean in XLA on the 3-channel input; the /std is folded into conv1.
            x = x - self.mean.reshape(1, 1, 1, 3)
        x = x.astype(jnp.bfloat16)

        idx, n = 0, len(self.layers)
        while idx < n:
            lyr = self.layers[idx]
            if lyr[0] == 'conv':
                w2d, b2 = self.kernel_params[idx]
                fuse_relu = (idx + 1 < n) and (self.layers[idx + 1][0] == 'relu')
                is_last = (idx + (2 if fuse_relu else 1)) >= n
                xp = jnp.pad(x, ((0, 0), (1, 1), (1, 1), (0, 0)))  # glue: SAME padding
                x = conv3x3_nhwc(xp, w2d, b2, relu=fuse_relu,
                                 out_dtype=jnp.float32 if is_last else jnp.bfloat16)
                idx += 2 if fuse_relu else 1
            elif lyr[0] == 'pool':
                x = maxpool2x2_nhwc(x)
                idx += 1
            else:                                                 # standalone relu
                x = jnp.maximum(x, 0.0)
                idx += 1
        return jnp.transpose(x, (0, 3, 1, 2)).astype(jnp.float32)  # glue -> NCHW


# ----------------------------- reference (pure JAX) ------------------------- #

def _reference_forward(model, x_nchw):
    # f32 reference: explicit normalization, unfolded original weights.
    x = jnp.transpose(x_nchw, (0, 2, 3, 1))
    if model.use_input_norm:
        x = (x - model.mean.reshape(1, 1, 1, 3)) / model.std.reshape(1, 1, 1, 3)
    idx, n = 0, len(model.layers)
    while idx < n:
        lyr = model.layers[idx]
        if lyr[0] == 'conv':
            w, b = model.params[idx]
            w_hwio = jnp.transpose(w, (2, 3, 1, 0))
            x = jax.lax.conv_general_dilated(
                x, w_hwio, window_strides=(1, 1), padding='SAME',
                dimension_numbers=('NHWC', 'HWIO', 'NHWC'),
                precision=jax.lax.Precision.HIGHEST) + b.reshape(1, 1, 1, -1)
            fuse_relu = (idx + 1 < n) and (model.layers[idx + 1][0] == 'relu')
            if fuse_relu:
                x = jnp.maximum(x, 0.0)
            idx += 2 if fuse_relu else 1
        elif lyr[0] == 'pool':
            x = jax.lax.reduce_window(x, -jnp.inf, jax.lax.max,
                                      (1, 2, 2, 1), (1, 2, 2, 1), 'VALID')
            idx += 1
        else:
            x = jnp.maximum(x, 0.0)
            idx += 1
    return jnp.transpose(x, (0, 3, 1, 2))


# ------------------------------------ main ----------------------------------- #

if __name__ == "__main__":
    key = jax.random.PRNGKey(0)
    kx, kp = jax.random.split(key)
    # Input images in [0, 1], NCHW like the PyTorch module. Spatial 32 keeps W a
    # multiple of 8 at every stage (32 -> 16 -> 8) which is TPU sublane-friendly.
    x = jax.random.uniform(kx, (2, 3, 32, 32), dtype=jnp.float32)

    model = VGGFeatureExtractorPallas(layer='relu3_1', use_input_norm=True, key=kp)

    y = jax.block_until_ready(model(x))
    assert y.shape == (2, 256, 8, 8), y.shape
    assert bool(jnp.all(jnp.isfinite(y)))

    y_ref = jax.block_until_ready(_reference_forward(model, x))
    # bf16 activations/weights through 7 conv layers vs an f32 reference
    assert jnp.allclose(y, y_ref, rtol=5e-2, atol=1e-1), float(jnp.max(jnp.abs(y - y_ref)))

    print("KERNEL_OK")
</pallas_src>

<mosaic_0001>
module attributes {stable_mosaic.version = 11 : i64} {
  func.func @_conv3x3_kernel(%arg0: i32, %arg1: i32, %arg2: memref<1x34x34x3xbf16, #tpu.memory_space<vmem>>, %arg3: memref<27x64xbf16, #tpu.memory_space<vmem>>, %arg4: memref<1x64xf32, #tpu.memory_space<vmem>>, %arg5: memref<1x4x32x64xbf16, #tpu.memory_space<vmem>>) attributes {dimension_semantics = [#tpu.dimension_semantics<parallel>, #tpu.dimension_semantics<parallel>], iteration_bounds = array<i64: 2, 8>, scalar_prefetch = 0 : i64, scratch_operands = 0 : i64, tpu.core_type = #tpu.core_type<tc>, window_params = [{transform_indices = @transform_0, window_bounds = array<i64: 1, 34, 34, 3>}, {pipeline_mode = #tpu.pipeline_mode<synchronous>, transform_indices = @transform_1, window_bounds = array<i64: 27, 64>}, {pipeline_mode = #tpu.pipeline_mode<synchronous>, transform_indices = @transform_2, window_bounds = array<i64: 1, 64>}, {transform_indices = @transform_3, window_bounds = array<i64: 1, 4, 32, 64>}]} {
    %c4_i32 = arith.constant 4 : i32
    %0 = arith.muli %arg1, %c4_i32 : i32
    %1 = tpu.assume_multiple %0, 4 : i32
    %c0 = arith.constant 0 : index
    %2 = arith.index_cast %1 : i32 to index
    %c0_0 = arith.constant 0 : index
    %c0_1 = arith.constant 0 : index
    %3 = vector.load %arg2[%c0, %2, %c0_0, %c0_1] : memref<1x34x34x3xbf16, #tpu.memory_space<vmem>>, vector<1x6x34x3xbf16>
    %4 = vector.shape_cast %3 : vector<1x6x34x3xbf16> to vector<6x34x3xbf16>
    %cst = arith.constant 0.000000e+00 : f32
    %5 = vector.broadcast %cst : f32 to vector<128x64xf32>
    %6 = vector.extract_strided_slice %4 {offsets = [0, 0, 0], sizes = [4, 32, 3], strides = [1, 1, 1]} : vector<6x34x3xbf16> to vector<4x32x3xbf16>
    %7 = vector.shape_cast %6 : vector<4x32x3xbf16> to vector<128x3xbf16>
    %c0_2 = arith.constant 0 : index
    %c0_3 = arith.constant 0 : index
    %8 = vector.load %arg3[%c0_2, %c0_3] : memref<27x64xbf16, #tpu.memory_space<vmem>>, vector<3x64xbf16>
    %cst_4 = arith.constant dense<0.000000e+00> : vector<128x64xf32>
    %9 = tpu.matmul %7, %8, %cst_4 {dimension_numbers = #tpu.dot_dimension_numbers<[1], [0], [0], [1], [0, 0, 1, 1], [], []>} : vector<128x3xbf16>, vector<3x64xbf16>, vector<128x64xf32> -> vector<128x64xf32>
    %10 = arith.addf %5, %9 : vector<128x64xf32>
    %11 = vector.extract_strided_slice %4 {offsets = [0, 1, 0], sizes = [4, 32, 3], strides = [1, 1, 1]} : vector<6x34x3xbf16> to vector<4x32x3xbf16>
    %12 = vector.shape_cast %11 : vector<4x32x3xbf16> to vector<128x3xbf16>
    %c3 = arith.constant 3 : index
    %c0_5 = arith.constant 0 : index
    %13 = vector.load %arg3[%c3, %c0_5] : memref<27x64xbf16, #tpu.memory_space<vmem>>, vector<3x64xbf16>
    %cst_6 = arith.constant dense<0.000000e+00> : vector<128x64xf32>
    %14 = tpu.matmul %12, %13, %cst_6 {dimension_numbers = #tpu.dot_dimension_numbers<[1], [0], [0], [1], [0, 0, 1, 1], [], []>} : vector<128x3xbf16>, vector<3x64xbf16>, vector<128x64xf32> -> vector<128x64xf32>
    %15 = arith.addf %10, %14 : vector<128x64xf32>
    %16 = vector.extract_strided_slice %4 {offsets = [0, 2, 0], sizes = [4, 32, 3], strides = [1, 1, 1]} : vector<6x34x3xbf16> to vector<4x32x3xbf16>
    %17 = vector.shape_cast %16 : vector<4x32x3xbf16> to vector<128x3xbf16>
    %c6 = arith.constant 6 : index
    %c0_7 = arith.constant 0 : index
    %18 = vector.load %arg3[%c6, %c0_7] : memref<27x64xbf16, #tpu.memory_space<vmem>>, vector<3x64xbf16>
    %cst_8 = arith.constant dense<0.000000e+00> : vector<128x64xf32>
    %19 = tpu.matmul %17, %18, %cst_8 {dimension_numbers = #tpu.dot_dimension_numbers<[1], [0], [0], [1], [0, 0, 1, 1], [], []>} : vector<128x3xbf16>, vector<3x64xbf16>, vector<128x64xf32> -> vector<128x64xf32>
    %20 = arith.addf %15, %19 : vector<128x64xf32>
    %21 = vector.extract_strided_slice %4 {offsets = [1, 0, 0], sizes = [4, 32, 3], strides = [1, 1, 1]} : vector<6x34x3xbf16> to vector<4x32x3xbf16>
    %22 = vector.shape_cast %21 : vector<4x32x3xbf16> to vector<128x3xbf16>
    %c9 = arith.constant 9 : index
    %c0_9 = arith.constant 0 : index
    %23 = vector.load %arg3[%c9, %c0_9] : memref<27x64xbf16, #tpu.memory_space<vmem>>, vector<3x64xbf16>
    %cst_10 = arith.constant dense<0.000000e+00> : vector<128x64xf32>
    %24 = tpu.matmul %22, %23, %cst_10 {dimension_numbers = #tpu.dot_dimension_numbers<[1], [0], [0], [1], [0, 0, 1, 1], [], []>} : vector<128x3xbf16>, vector<3x64xbf16>, vector<128x64xf32> -> vector<128x64xf32>
    %25 = arith.addf %20, %24 : vector<128x64xf32>
    %26 = vector.extract_strided_slice %4 {offsets = [1, 1, 0], sizes = [4, 32, 3], strides = [1, 1, 1]} : vector<6x34x3xbf16> to vector<4x32x3xbf16>
    %27 = vector.shape_cast %26 : vector<4x32x3xbf16> to vector<128x3xbf16>
    %c12 = arith.constant 12 : index
    %c0_11 = arith.constant 0 : index
    %28 = vector.load %arg3[%c12, %c0_11] : memref<27x64xbf16, #tpu.memory_space<vmem>>, vector<3x64xbf16>
    %cst_12 = arith.constant dense<0.000000e+00> : vector<128x64xf32>
    %29 = tpu.matmul %27, %28, %cst_12 {dimension_numbers = #tpu.dot_dimension_numbers<[1], [0], [0], [1], [0, 0, 1, 1], [], []>} : vector<128x3xbf16>, vector<3x64xbf16>, vector<128x64xf32> -> vector<128x64xf32>
    %30 = arith.addf %25, %29 : vector<128x64xf32>
    %31 = vector.extract_strided_slice %4 {offsets = [1, 2, 0], sizes = [4, 32, 3], strides = [1, 1, 1]} : vector<6x34x3xbf16> to vector<4x32x3xbf16>
    %32 = vector.shape_cast %31 : vector<4x32x3xbf16> to vector<128x3xbf16>
    %c15 = arith.constant 15 : index
    %c0_13 = arith.constant 0 : index
    %33 = vector.load %arg3[%c15, %c0_13] : memref<27x64xbf16, #tpu.memory_space<vmem>>, vector<3x64xbf16>
    %cst_14 = arith.constant dense<0.000000e+00> : vector<128x64xf32>
    %34 = tpu.matmul %32, %33, %cst_14 {dimension_numbers = #tpu.dot_dimension_numbers<[1], [0], [0], [1], [0, 0, 1, 1], [], []>} : vector<128x3xbf16>, vector<3x64xbf16>, vector<128x64xf32> -> vector<128x64xf32>
    %35 = arith.addf %30, %34 : vector<128x64xf32>
    %36 = vector.extract_strided_slice %4 {offsets = [2, 0, 0], sizes = [4, 32, 3], strides = [1, 1, 1]} : vector<6x34x3xbf16> to vector<4x32x3xbf16>
    %37 = vector.shape_cast %36 : vector<4x32x3xbf16> to vector<128x3xbf16>
    %c18 = arith.constant 18 : index
    %c0_15 = arith.constant 0 : index
    %38 = vector.load %arg3[%c18, %c0_15] : memref<27x64xbf16, #tpu.memory_space<vmem>>, vector<3x64xbf16>
    %cst_16 = arith.constant dense<0.000000e+00> : vector<128x64xf32>
    %39 = tpu.matmul %37, %38, %cst_16 {dimension_numbers = #tpu.dot_dimension_numbers<[1], [0], [0], [1], [0, 0, 1, 1], [], []>} : vector<128x3xbf16>, vector<3x64xbf16>, vector<128x64xf32> -> vector<128x64xf32>
    %40 = arith.addf %35, %39 : vector<128x64xf32>
    %41 = vector.extract_strided_slice %4 {offsets = [2, 1, 0], sizes = [4, 32, 3], strides = [1, 1, 1]} : vector<6x34x3xbf16> to vector<4x32x3xbf16>
    %42 = vector.shape_cast %41 : vector<4x32x3xbf16> to vector<128x3xbf16>
    %c21 = arith.constant 21 : index
    %c0_17 = arith.constant 0 : index
    %43 = vector.load %arg3[%c21, %c0_17] : memref<27x64xbf16, #tpu.memory_space<vmem>>, vector<3x64xbf16>
    %cst_18 = arith.constant dense<0.000000e+00> : vector<128x64xf32>
    %44 = tpu.matmul %42, %43, %cst_18 {dimension_numbers = #tpu.dot_dimension_numbers<[1], [0], [0], [1], [0, 0, 1, 1], [], []>} : vector<128x3xbf16>, vector<3x64xbf16>, vector<128x64xf32> -> vector<128x64xf32>
    %45 = arith.addf %40, %44 : vector<128x64xf32>
    %46 = vector.extract_strided_slice %4 {offsets = [2, 2, 0], sizes = [4, 32, 3], strides = [1, 1, 1]} : vector<6x34x3xbf16> to vector<4x32x3xbf16>
    %47 = vector.shape_cast %46 : vector<4x32x3xbf16> to vector<128x3xbf16>
    %c24 = arith.constant 24 : index
    %c0_19 = arith.constant 0 : index
    %48 = vector.load %arg3[%c24, %c0_19] : memref<27x64xbf16, #tpu.memory_space<vmem>>, vector<3x64xbf16>
    %cst_20 = arith.constant dense<0.000000e+00> : vector<128x64xf32>
    %49 = tpu.matmul %47, %48, %cst_20 {dimension_numbers = #tpu.dot_dimension_numbers<[1], [0], [0], [1], [0, 0, 1, 1], [], []>} : vector<128x3xbf16>, vector<3x64xbf16>, vector<128x64xf32> -> vector<128x64xf32>
    %50 = arith.addf %45, %49 : vector<128x64xf32>
    %c0_21 = arith.constant 0 : index
    %c0_22 = arith.constant 0 : index
    %51 = vector.load %arg4[%c0_21, %c0_22] : memref<1x64xf32, #tpu.memory_space<vmem>>, vector<1x64xf32>
    %52 = vector.broadcast %51 : vector<1x64xf32> to vector<128x64xf32>
    %53 = arith.addf %50, %52 : vector<128x64xf32>
    %cst_23 = arith.constant 0.000000e+00 : f32
    %54 = vector.broadcast %cst_23 : f32 to vector<128x64xf32>
    %55 = arith.maximumf %53, %54 : vector<128x64xf32>
    %56 = vector.shape_cast %55 : vector<128x64xf32> to vector<4x32x64xf32>
    %57 = arith.truncf %56 : vector<4x32x64xf32> to vector<4x32x64xbf16>
    %c0_24 = arith.constant 0 : index
    %c0_25 = arith.constant 0 : index
    %c0_26 = arith.constant 0 : index
    %c0_27 = arith.constant 0 : index
    %58 = vector.load %arg5[%c0_24, %c0_25, %c0_26, %c0_27] : memref<1x4x32x64xbf16, #tpu.memory_space<vmem>>, vector<1x4x32x64xbf16>
    %59 = vector.shape_cast %58 : vector<1x4x32x64xbf16> to vector<4x32x64xbf16>
    %60 = vector.shape_cast %57 : vector<4x32x64xbf16> to vector<1x4x32x64xbf16>
    tpu.vector_store %arg5[%c0_24, %c0_25, %c0_26, %c0_27], %60 {strides = array<i32>} : memref<1x4x32x64xbf16, #tpu.memory_space<vmem>>, vector<1x4x32x64xbf16>,
    return
  }
  func.func @transform_0(%arg0: i32, %arg1: i32) -> (i32, i32, i32, i32) {
    %c0_i32 = arith.constant 0 : i32
    %c0_i32_0 = arith.constant 0 : i32
    %c0_i32_1 = arith.constant 0 : i32
    %c0_i32_2 = arith.constant 0 : i32
    return %arg0, %c0_i32, %c0_i32_0, %c0_i32_1 : i32, i32, i32, i32
  }
  func.func @transform_1(%arg0: i32, %arg1: i32) -> (i32, i32) {
    %c0_i32 = arith.constant 0 : i32
    %c0_i32_0 = arith.constant 0 : i32
    %c0_i32_1 = arith.constant 0 : i32
    return %c0_i32, %c0_i32_0 : i32, i32
  }
  func.func @transform_2(%arg0: i32, %arg1: i32) -> (i32, i32) {
    %c0_i32 = arith.constant 0 : i32
    %c0_i32_0 = arith.constant 0 : i32
    %c0_i32_1 = arith.constant 0 : i32
    return %c0_i32, %c0_i32_0 : i32, i32
  }
  func.func @transform_3(%arg0: i32, %arg1: i32) -> (i32, i32, i32, i32) {
    %c0_i32 = arith.constant 0 : i32
    %c0_i32_0 = arith.constant 0 : i32
    %c0_i32_1 = arith.constant 0 : i32
    return %arg0, %arg1, %c0_i32, %c0_i32_0 : i32, i32, i32, i32
  }
}

</mosaic_0001>

<llo_original>
// kernel: tpu_custom_call.1
$region0: #{tpu_custom_call.1}
  #allocation0 [shape = 'u32[]', space=smem, size = 0x4, offset = 0x4, fixed_abs, tag = 'smem constant byte address 0x4 - core index']
  #allocation1 [shape = 'u32[144,128]{1,0:T(1,128)}', space=vmem, size = 0x12000, scoped, tag = 'internal scratch']
  %s0 = inlined_call_operand.vmem [shape: bf16[2,34,34,3], index: 0, kind: input, shape index: {}]
  %s1 = inlined_call_operand.vmem [shape: bf16[27,64], index: 1, kind: input, shape index: {}]
  %s2 = inlined_call_operand.vmem [shape: f32[1,64], index: 2, kind: input, shape index: {}]
  %s3 = inlined_call_operand.hbm [shape: bf16[2,32,32,64], index: 3, kind: output, shape index: {}]
  %s4 = sld [smem:[#allocation0]]
  $region45: #{tpu_custom_call.1} parent=0
    _
  %s6 = ssub.s32 1, %s4
  %s7 = scalar_select 0, %s6, %s4
  $region1: #{tpu_custom_call.1} parent=0
    #allocation2 [shape = 'u8[65536]{0}', space=vmem, size = 0x10000, scoped, tag = 'output window, operand 0']
    #allocation3 [shape = 's32[2]{0}', space=sflag, size = 0x8, scoped, tag = 'scoped memory for tpu_custom_call.1']
    %8 = vsyncpa [#allocation3], 0
    %s9 = scalar_lea.sflag [#allocation3], 1
    %10 = vsyncpa %s9, 0
    loop: start=0, step=1, limit=18
    $region2: #{tpu_custom_call.1} parent=1 // loop_pre_header
      _
    $region3: #{tpu_custom_call.1} parent=1 // loop_header
      %s12 = sphi 0, %s16
      %p13 = scmp.ge.s32.totalorder %s12, 18
      %s19 = sphi 0, %s31
      %s20 = sphi 0, %s27
      %s21 = sphi 0, %s19
      %s22 = sphi 0, %s20
      %s23 = sphi 0, %s21
      %s24 = sphi 0, %s22
      %s34 = sphi 0, %s36
      %s37 = sphi 0, %s34
      %s38 = sphi 0, %s37
      %s54 = sphi 0, %s38
      %s58 = sphi 0, %s58
      %s60 = sphi 0, %s58
      %s61 = sphi 0, %s60
      %s75 = sphi 0, %s61
      %s79 = sphi 0, %s79
      %s81 = sphi 0, %s79
      %s82 = sphi 0, %s81
      %s96 = sphi 0, %s82
      %s104 = sphi 0, %s106
      %s107 = sphi 0, %s104
      %s108 = sphi 0, %s107
      %s124 = sphi 0, %s108
    $region4: #{tpu_custom_call.1} parent=1 // loop_header_branch
      %15 = sbr.rel (%p13) target = $region8
    $region5: #{tpu_custom_call.1} parent=1 // loop_body
      %s17 = ssub.s32 %s12, 1
      %s18 = ssub.s32 %s12, 2
      %s25 = sadd.s32 1, %s20
      %p26 = scmp.ge.s32.totalorder %s25, 8
      %s27 = scalar_select %p26, 0, %s25
      %s28 = sadd.s32 1, %s19
      %s29 = scalar_select %p26, %s28, %s19
      %p30 = scmp.ge.s32.totalorder %s29, 2
      %s31 = scalar_select %p30, 0, %s29
      %s32 = ssub.s32 %s19, %s31
      %p33 = scmp.eq.s32.totalorder %s32, 0
      %s35 = sadd.s32 %s34, 1
      %s36 = scalar_select %p33, %s34, %s35
      %p39 = pneg %p33
      %p40 = scmp.eq.s32.totalorder %s12, 15
      %p41 = por %p39, %p40
      %p42 = scmp.ne.s32.totalorder %s34, %s37
      %p43 = scmp.eq.s32.totalorder %s12, 0
      %p44 = por %p42, %p43
      %p45 = scmp.ne.s32.totalorder %s34, %s37
      %p46 = scmp.eq.s32.totalorder %s17, 15
      %p47 = por %p45, %p46
      %p48 = scmp.ne.s32.totalorder %s37, %s38
      %p49 = scmp.eq.s32.totalorder %s17, 0
      %p50 = por %p48, %p49
      %p51 = scmp.ne.s32.totalorder %s37, %s38
      %p52 = scmp.eq.s32.totalorder %s18, 15
      %p53 = por %p51, %p52
      %p55 = scmp.ne.s32.totalorder %s38, %s54
      %p56 = scmp.eq.s32.totalorder %s18, 0
      %p57 = por %p55, %p56
      %s59 = sadd.s32 %s58, 1
      %p62 = scmp.eq.s32.totalorder %s12, 15
      %p63 = scmp.ne.s32.totalorder %s58, %s60
      %p64 = scmp.eq.s32.totalorder %s12, 0
      %p65 = por %p63, %p64
      %p66 = scmp.ne.s32.totalorder %s58, %s60
      %p67 = scmp.eq.s32.totalorder %s17, 15
      %p68 = por %p66, %p67
      %p69 = scmp.ne.s32.totalorder %s60, %s61
      %p70 = scmp.eq.s32.totalorder %s17, 0
      %p71 = por %p69, %p70
      %p72 = scmp.ne.s32.totalorder %s60, %s61
      %p73 = scmp.eq.s32.totalorder %s18, 15
      %p74 = por %p72, %p73
      %p76 = scmp.ne.s32.totalorder %s61, %s75
      %p77 = scmp.eq.s32.totalorder %s18, 0
      %p78 = por %p76, %p77
      %s80 = sadd.s32 %s79, 1
      %p83 = scmp.eq.s32.totalorder %s12, 15
      %p84 = scmp.ne.s32.totalorder %s79, %s81
      %p85 = scmp.eq.s32.totalorder %s12, 0
      %p86 = por %p84, %p85
      %p87 = scmp.ne.s32.totalorder %s79, %s81
      %p88 = scmp.eq.s32.totalorder %s17, 15
      %p89 = por %p87, %p88
      %p90 = scmp.ne.s32.totalorder %s81, %s82
      %p91 = scmp.eq.s32.totalorder %s17, 0
      %p92 = por %p90, %p91
      %p93 = scmp.ne.s32.totalorder %s81, %s82
      %p94 = scmp.eq.s32.totalorder %s18, 15
      %p95 = por %p93, %p94
      %p97 = scmp.ne.s32.totalorder %s82, %s96
      %p98 = scmp.eq.s32.totalorder %s18, 0
      %p99 = por %p97, %p98
      %s100 = ssub.s32 %s19, %s31
      %s101 = ssub.s32 %s20, %s27
      %s102 = sor.u32 %s100, %s101
      %p103 = scmp.eq.s32.totalorder %s102, 0
      %s105 = sadd.s32 %s104, 1
      %s106 = scalar_select %p103, %s104, %s105
      %p109 = pneg %p103
      %p110 = scmp.eq.s32.totalorder %s12, 15
      %p111 = por %p109, %p110
      %p112 = scmp.ne.s32.totalorder %s104, %s107
      %p113 = scmp.eq.s32.totalorder %s12, 0
      %p114 = por %p112, %p113
      %p115 = scmp.ne.s32.totalorder %s104, %s107
      %p116 = scmp.eq.s32.totalorder %s17, 15
      %p117 = por %p115, %p116
      %p118 = scmp.ne.s32.totalorder %s107, %s108
      %p119 = scmp.eq.s32.totalorder %s17, 0
      %p120 = por %p118, %p119
      %p121 = scmp.ne.s32.totalorder %s107, %s108
      %p122 = scmp.eq.s32.totalorder %s18, 15
      %p123 = por %p121, %p122
      %p125 = scmp.ne.s32.totalorder %s108, %s124
      %p126 = scmp.eq.s32.totalorder %s18, 0
      %p127 = por %p125, %p126
      %p128 = scmp.le.s32.totalorder 1, %s12
      %p129 = scmp.lt.s32.totalorder %s12, 17
      %p130 = pnand %p128, %p129
      %p131 = pneg %p130
      // Predicated region
      $region9: #{tpu_custom_call.1} parent=5 // pred_check
        _
      $region10: #{tpu_custom_call.1} parent=5 // pred_check_branch
        %133 = sbr.rel (%p130) target = $region12
      $region11: #{tpu_custom_call.1} parent=5 // pred_region
        %s134 = ssub.s32 %s12, 1
        // Predicated region
        $region13: #{tpu_custom_call.1} parent=11 // pred_check
          %p135 = pneg %p71
        $region14: #{tpu_custom_call.1} parent=11 // pred_check_branch
          %137 = sbr.rel (%p135) target = $region16
        $region15: #{tpu_custom_call.1} parent=11 // pred_region
          _
        $region16: #{tpu_custom_call.1} parent=11 // pred_fallthru
          _
        // Predicated region
        $region17: #{tpu_custom_call.1} parent=11 // pred_check
          %p138 = pneg %p92
        $region18: #{tpu_custom_call.1} parent=11 // pred_check_branch
          %140 = sbr.rel (%p138) target = $region20
        $region19: #{tpu_custom_call.1} parent=11 // pred_region
          _
        $region20: #{tpu_custom_call.1} parent=11 // pred_fallthru
          _
      $region12: #{tpu_custom_call.1} parent=5 // pred_fallthru
        _
      %p141 = scmp.lt.s32.totalorder %s12, 16
      // Predicated region
      $region21: #{tpu_custom_call.1} parent=5 // pred_check
        %p142 = pneg %p141
      $region22: #{tpu_custom_call.1} parent=5 // pred_check_branch
        %144 = sbr.rel (%p142) target = $region24
      $region23: #{tpu_custom_call.1} parent=5 // pred_region
        // Predicated region
        $region25: #{tpu_custom_call.1} parent=23 // pred_check
          %p145 = pneg %p44
        $region26: #{tpu_custom_call.1} parent=23 // pred_check_branch
          %147 = sbr.rel (%p145) target = $region28
        $region27: #{tpu_custom_call.1} parent=23 // pred_region
          %p148 = scmp.lt.s32.totalorder %s19, 1
          %s149 = scalar_select %p148, %s19, 1
          %s150 = smul.addr %s149, 170
          %s151 = smul.addr %s150, 4
          %s152 = scalar_lea.vmem %s0, %s151
        $region28: #{tpu_custom_call.1} parent=23 // pred_fallthru
          _
      $region24: #{tpu_custom_call.1} parent=5 // pred_fallthru
        _
      %p153 = scmp.le.s32.totalorder 1, %s12
      %p154 = scmp.lt.s32.totalorder %s12, 17
      %p155 = pnand %p153, %p154
      %p156 = pneg %p155
      // Predicated region
      $region29: #{tpu_custom_call.1} parent=5 // pred_check
        _
      $region30: #{tpu_custom_call.1} parent=5 // pred_check_branch
        %158 = sbr.rel (%p155) target = $region32
      $region31: #{tpu_custom_call.1} parent=5 // pred_region
        %s159 = ssub.s32 %s12, 1
        %p160 = scmp.lt.s32.totalorder %s21, 1
        %s161 = scalar_select %p160, %s21, 1
        %s162 = smul.addr %s161, 170
        %s163 = smul.addr %s162, 4
        %s164 = scalar_lea.vmem %s0, %s163
        %p165 = pneg %p50
        %p166 = pneg %p47
        %p167 = pneg %p71
        %p168 = pneg %p68
        %p169 = pneg %p92
        %p170 = pneg %p89
        %p171 = pneg %p120
        %p172 = pneg %p117
        %s173 = sand.u32 %s107, 1
        %s174 = scalar_lea.sflag [#allocation3], %s173
        %s175 = sand.u32 %s107, 1
        %s176 = smul.addr %s175, 64
        %s177 = scalar_lea.vmem [#allocation2], %s176
        %p178 = scmp.lt.s32.totalorder %s21, 1
        %s179 = scalar_select %p178, %s21, 1
        %s180 = smul.addr %s179, 170
        %s181 = smul.addr %s180, 4
        %s182 = scalar_lea.vmem %s0, %s181
        %s183 = smul.u32 4, %s22
        %s185 = smul.u32 %s22, 4
        %s186 = smul.u32 %s185, 5
        %s187 = smul.addr %s186, 4
        %s188 = scalar_lea.vmem %s182, %s187
        %v189 = vld [vmem:[%s188] sm:$0xf]
        %v190 = vld [vmem:[%s188 + $0x4] sm:$0xf]
        %v191 = vld [vmem:[%s188 + $0x8] sm:$0xf]
        %v192 = vld [vmem:[%s188 + $0xc] sm:$0xf]
        %v193 = vld [vmem:[%s188 + $0x10] sm:$0x1]
        %v194 = vld [vmem:[%s188 + $0x14] sm:$0xf]
        %v195 = vld [vmem:[%s188 + $0x18] sm:$0xf]
        %v196 = vld [vmem:[%s188 + $0x1c] sm:$0xf]
        %v197 = vld [vmem:[%s188 + $0x20] sm:$0xf]
        %v198 = vld [vmem:[%s188 + $0x24] sm:$0x1]
        %v199 = vld [vmem:[%s188 + $0x28] sm:$0xf]
        %v200 = vld [vmem:[%s188 + $0x2c] sm:$0xf]
        %v201 = vld [vmem:[%s188 + $0x30] sm:$0xf]
        %v202 = vld [vmem:[%s188 + $0x34] sm:$0xf]
        %v203 = vld [vmem:[%s188 + $0x38] sm:$0x1]
        %v204 = vld [vmem:[%s188 + $0x3c] sm:$0xf]
        %v205 = vld [vmem:[%s188 + $0x40] sm:$0xf]
        %v206 = vld [vmem:[%s188 + $0x44] sm:$0xf]
        %v207 = vld [vmem:[%s188 + $0x48] sm:$0xf]
        %v208 = vld [vmem:[%s188 + $0x4c] sm:$0x1]
        %v209 = vld [vmem:[%s188 + $0x50] sm:$0xf]
        %v210 = vld [vmem:[%s188 + $0x54] sm:$0xf]
        %v211 = vld [vmem:[%s188 + $0x58] sm:$0xf]
        %v212 = vld [vmem:[%s188 + $0x5c] sm:$0xf]
        %v213 = vld [vmem:[%s188 + $0x60] sm:$0x1]
        %v214 = vld [vmem:[%s188 + $0x64] sm:$0xf]
        %v215 = vld [vmem:[%s188 + $0x68] sm:$0xf]
        %v216 = vld [vmem:[%s188 + $0x6c] sm:$0xf]
        %v217 = vld [vmem:[%s188 + $0x70] sm:$0xf]
        %v218 = vld [vmem:[%s188 + $0x74] sm:$0x1]
        %v219 = vld [vmem:[%s1] sm:$0x3]
        %vm220 = vsmask.f32 3328
        %vm221 = vsmask.f32 7440
        %vm222 = vmor %vm220, %vm221
        %v224 = vshrl.u32 %v189, 16
        %v226 = vrot.slane %v224, 4
        %v227 = vshll.u32 %v189, 16
        %v229 = vrot.slane %v227, 5
        %v230 = vor.u32 %v226, %v229
        %v231 = vrot.slane %v230, 4
        %v233 = vshll.u32 %v190, 16
        %v235 = vrot.slane %v233, 5
        %v236 = vsel %vm222, %v231, %v235
        %v237 = vshrl.u32 %v190, 16
        %v239 = vrot.slane %v237, 4
        %v240 = vor.u32 %v239, %v235
        %v241 = vrot.slane %v240, 4
        %v243 = vshll.u32 %v191, 16
        %v245 = vrot.slane %v243, 5
        %v246 = vsel %vm222, %v241, %v245
        %v247 = vshrl.u32 %v191, 16
        %v249 = vrot.slane %v247, 4
        %v250 = vor.u32 %v249, %v245
        %v251 = vrot.slane %v250, 4
        %v253 = vshll.u32 %v192, 16
        %v255 = vrot.slane %v253, 5
        %v256 = vsel %vm222, %v251, %v255
        %v257 = vshrl.u32 %v192, 16
        %v259 = vrot.slane %v257, 4
        %v260 = vor.u32 %v259, %v255
        %v261 = vrot.slane %v260, 4
        %v263 = vshll.u32 %v193, 16
        %v265 = vrot.slane %v263, 5
        %v266 = vsel %vm222, %v261, %v265
        %v268 = vshrl.u32 %v194, 16
        %v270 = vrot.slane %v268, 4
        %v271 = vshll.u32 %v194, 16
        %v273 = vrot.slane %v271, 5
        %v274 = vor.u32 %v270, %v273
        %v275 = vrot.slane %v274, 4
        %v277 = vshll.u32 %v195, 16
        %v279 = vrot.slane %v277, 5
        %v280 = vsel %vm222, %v275, %v279
        %v281 = vshrl.u32 %v195, 16
        %v283 = vrot.slane %v281, 4
        %v284 = vor.u32 %v283, %v279
        %v285 = vrot.slane %v284, 4
        %v287 = vshll.u32 %v196, 16
        %v289 = vrot.slane %v287, 5
        %v290 = vsel %vm222, %v285, %v289
        %v291 = vshrl.u32 %v196, 16
        %v293 = vrot.slane %v291, 4
        %v294 = vor.u32 %v293, %v289
        %v295 = vrot.slane %v294, 4
        %v297 = vshll.u32 %v197, 16
        %v299 = vrot.slane %v297, 5
        %v300 = vsel %vm222, %v295, %v299
        %v301 = vshrl.u32 %v197, 16
        %v303 = vrot.slane %v301, 4
        %v304 = vor.u32 %v303, %v299
        %v305 = vrot.slane %v304, 4
        %v307 = vshll.u32 %v198, 16
        %v309 = vrot.slane %v307, 5
        %v310 = vsel %vm222, %v305, %v309
        %v312 = vshrl.u32 %v199, 16
        %v314 = vrot.slane %v312, 4
        %v315 = vshll.u32 %v199, 16
        %v317 = vrot.slane %v315, 5
        %v318 = vor.u32 %v314, %v317
        %v319 = vrot.slane %v318, 4
        %v321 = vshll.u32 %v200, 16
        %v323 = vrot.slane %v321, 5
        %v324 = vsel %vm222, %v319, %v323
        %v325 = vshrl.u32 %v200, 16
        %v327 = vrot.slane %v325, 4
        %v328 = vor.u32 %v327, %v323
        %v329 = vrot.slane %v328, 4
        %v331 = vshll.u32 %v201, 16
        %v333 = vrot.slane %v331, 5
        %v334 = vsel %vm222, %v329, %v333
        %v335 = vshrl.u32 %v201, 16
        %v337 = vrot.slane %v335, 4
        %v338 = vor.u32 %v337, %v333
        %v339 = vrot.slane %v338, 4
        %v341 = vshll.u32 %v202, 16
        %v343 = vrot.slane %v341, 5
        %v344 = vsel %vm222, %v339, %v343
        %v345 = vshrl.u32 %v202, 16
        %v347 = vrot.slane %v345, 4
        %v348 = vor.u32 %v347, %v343
        %v349 = vrot.slane %v348, 4
        %v351 = vshll.u32 %v203, 16
        %v353 = vrot.slane %v351, 5
        %v354 = vsel %vm222, %v349, %v353
        %v356 = vshrl.u32 %v204, 16
        %v358 = vrot.slane %v356, 4
        %v359 = vshll.u32 %v204, 16
        %v361 = vrot.slane %v359, 5
        %v362 = vor.u32 %v358, %v361
        %v363 = vrot.slane %v362, 4
        %v365 = vshll.u32 %v205, 16
        %v367 = vrot.slane %v365, 5
        %v368 = vsel %vm222, %v363, %v367
        %v369 = vshrl.u32 %v205, 16
        %v371 = vrot.slane %v369, 4
        %v372 = vor.u32 %v371, %v367
        %v373 = vrot.slane %v372, 4
        %v375 = vshll.u32 %v206, 16
        %v377 = vrot.slane %v375, 5
        %v378 = vsel %vm222, %v373, %v377
        %v379 = vshrl.u32 %v206, 16
        %v381 = vrot.slane %v379, 4
        %v382 = vor.u32 %v381, %v377
        %v383 = vrot.slane %v382, 4
        %v385 = vshll.u32 %v207, 16
        %v387 = vrot.slane %v385, 5
        %v388 = vsel %vm222, %v383, %v387
        %v389 = vshrl.u32 %v207, 16
        %v391 = vrot.slane %v389, 4
        %v392 = vor.u32 %v391, %v387
        %v393 = vrot.slane %v392, 4
        %v395 = vshll.u32 %v208, 16
        %v397 = vrot.slane %v395, 5
        %v398 = vsel %vm222, %v393, %v397
        %v399 = vld [vmem:[%s1] sm:$0x6]
        %v400 = vunpack.c.l.b16 %v236
        %v401 = vunpack.c.l.b16 %v246
        %v402 = vunpack.c.l.b16 %v256
        %v403 = vunpack.c.l.b16 %v266
        %v404 = vunpack.c.l.b16 %v280
        %v405 = vunpack.c.l.b16 %v290
        %v406 = vunpack.c.l.b16 %v300
        %v407 = vunpack.c.l.b16 %v310
        %v408 = vunpack.c.l.b16 %v324
        %v409 = vunpack.c.l.b16 %v334
        %v410 = vunpack.c.l.b16 %v344
        %v411 = vunpack.c.l.b16 %v354
        %v412 = vunpack.c.l.b16 %v368
        %v413 = vunpack.c.l.b16 %v378
        %v414 = vunpack.c.l.b16 %v388
        %v415 = vunpack.c.l.b16 %v398
        %v416 = vpack.c.b16 %v401, %v400
        %v417 = vpack.c.b16 %v403, %v402
        %v418 = vpack.c.b16 %v405, %v404
        %v419 = vpack.c.b16 %v407, %v406
        %v420 = vpack.c.b16 %v409, %v408
        %v421 = vpack.c.b16 %v411, %v410
        %v422 = vpack.c.b16 %v413, %v412
        %v423 = vpack.c.b16 %v415, %v414
        %v425 = vunpack.c.l.b16 %v399
        %v426 = vpack.c.b16 %v425, %v425
        %v428 = vshrl.u32 %v426, 16
        %v430 = vrot.slane %v428, 1
        %v431 = vshll.u32 %v426, 16
        %v433 = vrot.slane %v431, 2
        %v434 = vor.u32 %v430, %v433
        %vm435 = vcmask 23552
        %v437 = vsel %vm435, %v416, 0
        %v440 = vsel %vm435, %v417, 0
        %v443 = vsel %vm435, %v418, 0
        %v446 = vsel %vm435, %v419, 0
        %v449 = vsel %vm435, %v420, 0
        %v452 = vsel %vm435, %v421, 0
        %v455 = vsel %vm435, %v422, 0
        %v458 = vsel %vm435, %v423, 0
        %vm460 = vcmask 1040384
        %vm461 = vcmask 1041408
        %v462 = vsel %vm460, 4294967295, 65535
        %v463 = vsel %vm461, %v462, 0
        %v465 = vand.u32 %v434, %v463
        %467 = vmatprep.subr.bf16.mxu0 0
        %468 = vmatpush1.bf16.msra.mxu0 %v465
        %469 = vmatprep.subr.bf16.mxu0 0
        %470 = vmatpush1.bf16.msra.mxu0 0
        %471 = vmatprep.subr.bf16.mxu0 0
        %472 = vmatpush1.bf16.msra.mxu0 0
        %473 = vmatprep.subr.bf16.mxu0 0
        %474 = vmatpush1.bf16.msra.mxu0 0
        %475 = vmatprep.subr.bf16.mxu0 0
        %476 = vmatpush1.bf16.msra.mxu0 0
        %477 = vmatprep.subr.bf16.mxu0 0
        %478 = vmatpush1.bf16.msra.mxu0 0
        %479 = vmatprep.subr.bf16.mxu0 0
        %480 = vmatpush1.bf16.msra.mxu0 0
        %481 = vmatprep.subr.bf16.mxu0 0
        %482 = vmatpush1.bf16.msra.mxu0 0
        %483 = vmatprep.subr.bf16.mxu0 0
        %484 = vmatpush1.bf16.msra.mxu0 0
        %485 = vmatprep.subr.bf16.mxu0 0
        %486 = vmatpush1.bf16.msra.mxu0 0
        %487 = vmatprep.subr.bf16.mxu0 0
        %488 = vmatpush1.bf16.msra.mxu0 0
        %489 = vmatprep.subr.bf16.mxu0 0
        %490 = vmatpush1.bf16.msra.mxu0 0
        %491 = vmatprep.subr.bf16.mxu0 0
        %492 = vmatpush1.bf16.msra.mxu0 0
        %493 = vmatprep.subr.bf16.mxu0 0
        %494 = vmatpush1.bf16.msra.mxu0 0
        %495 = vmatprep.subr.bf16.mxu0 0
        %496 = vmatpush1.bf16.msra.mxu0 0
        %497 = vmatprep.subr.bf16.mxu0 0
        %498 = vmatpush1.bf16.msra.mxu0 0
        %499 = vmatprep.mubr.bf16.mxu0 0
        %500 = vmatmul.mubr.bf16.gmra.mrb[0].mxu0 %v437
        %v501 = vpop.f32.mrb[0].mxu0
        %v502 = vadd.f32 0.0, %v501
        %v503 = vpop.f32.mrb[0].mxu0
        %v504 = vpop.f32.mrb[0].mxu0
        %v505 = vadd.f32 0.0, %v504
        %v506 = vpop.f32.mrb[0].mxu0
        %507 = vmatprep.mubr.bf16.mxu0 0
        %508 = vmatmul.mubr.bf16.gmra.mrb[0].mxu0 %v440
        %v509 = vpop.f32.mrb[0].mxu0
        %v510 = vadd.f32 0.0, %v509
        %v511 = vpop.f32.mrb[0].mxu0
        %v512 = vpop.f32.mrb[0].mxu0
        %v513 = vadd.f32 0.0, %v512
        %v514 = vpop.f32.mrb[0].mxu0
        %515 = vmatprep.mubr.bf16.mxu0 0
        %516 = vmatmul.mubr.bf16.gmra.mrb[0].mxu0 %v443
        %v517 = vpop.f32.mrb[0].mxu0
        %v518 = vadd.f32 0.0, %v517
        %v519 = vpop.f32.mrb[0].mxu0
        %v520 = vpop.f32.mrb[0].mxu0
        %v521 = vadd.f32 0.0, %v520
        %v522 = vpop.f32.mrb[0].mxu0
        %523 = vmatprep.mubr.bf16.mxu0 0
        %524 = vmatmul.mubr.bf16.gmra.mrb[0].mxu0 %v446
        %v525 = vpop.f32.mrb[0].mxu0
        %v526 = vadd.f32 0.0, %v525
        %v527 = vpop.f32.mrb[0].mxu0
        %v528 = vpop.f32.mrb[0].mxu0
        %v529 = vadd.f32 0.0, %v528
        %v530 = vpop.f32.mrb[0].mxu0
        %531 = vmatprep.mubr.bf16.mxu0 0
        %532 = vmatmul.mubr.bf16.gmra.mrb[0].mxu0 %v449
        %v533 = vpop.f32.mrb[0].mxu0
        %v534 = vadd.f32 0.0, %v533
        %v535 = vpop.f32.mrb[0].mxu0
        %v536 = vpop.f32.mrb[0].mxu0
        %v537 = vadd.f32 0.0, %v536
        %v538 = vpop.f32.mrb[0].mxu0
        %539 = vmatprep.mubr.bf16.mxu0 0
        %540 = vmatmul.mubr.bf16.gmra.mrb[0].mxu0 %v452
        %v541 = vpop.f32.mrb[0].mxu0
        %v542 = vadd.f32 0.0, %v541
        %v543 = vpop.f32.mrb[0].mxu0
        %v544 = vpop.f32.mrb[0].mxu0
        %v545 = vadd.f32 0.0, %v544
        %v546 = vpop.f32.mrb[0].mxu0
        %547 = vmatprep.mubr.bf16.mxu0 0
        %548 = vmatmul.mubr.bf16.gmra.mrb[0].mxu0 %v455
        %v549 = vpop.f32.mrb[0].mxu0
        %v550 = vadd.f32 0.0, %v549
        %v551 = vpop.f32.mrb[0].mxu0
        %v552 = vpop.f32.mrb[0].mxu0
        %v553 = vadd.f32 0.0, %v552
        %v554 = vpop.f32.mrb[0].mxu0
        %555 = vmatprep.mubr.bf16.mxu0 0
        %556 = vmatmul.mubr.bf16.gmra.mrb[0].mxu0 %v458
        %v557 = vpop.f32.mrb[0].mxu0
        %v558 = vadd.f32 0.0, %v557
        %v559 = vpop.f32.mrb[0].mxu0
        %v560 = vpop.f32.mrb[0].mxu0
        %v561 = vadd.f32 0.0, %v560
        %v562 = vpop.f32.mrb[0].mxu0
        %563 = vdwg.mxu0
        %v580 = vunpack.c.l.b16 %v189
        %v581 = vunpack.c.l.b16 %v190
        %v582 = vunpack.c.l.b16 %v191
        %v583 = vunpack.c.l.b16 %v192
        %v584 = vunpack.c.l.b16 %v194
        %v585 = vunpack.c.l.b16 %v195
        %v586 = vunpack.c.l.b16 %v196
        %v587 = vunpack.c.l.b16 %v197
        %v588 = vunpack.c.l.b16 %v199
        %v589 = vunpack.c.l.b16 %v200
        %v590 = vunpack.c.l.b16 %v201
        %v591 = vunpack.c.l.b16 %v202
        %v592 = vunpack.c.l.b16 %v204
        %v593 = vunpack.c.l.b16 %v205
        %v594 = vunpack.c.l.b16 %v206
        %v595 = vunpack.c.l.b16 %v207
        %v596 = vpack.c.b16 %v581, %v580
        %v597 = vpack.c.b16 %v583, %v582
        %v598 = vpack.c.b16 %v585, %v584
        %v599 = vpack.c.b16 %v587, %v586
        %v600 = vpack.c.b16 %v589, %v588
        %v601 = vpack.c.b16 %v591, %v590
        %v602 = vpack.c.b16 %v593, %v592
        %v603 = vpack.c.b16 %v595, %v594
        %v605 = vsel %vm435, %v596, 0
        %v608 = vsel %vm435, %v597, 0
        %v611 = vsel %vm435, %v598, 0
        %v614 = vsel %vm435, %v599, 0
        %v617 = vsel %vm435, %v600, 0
        %v620 = vsel %vm435, %v601, 0
        %v623 = vsel %vm435, %v602, 0
        %v626 = vsel %vm435, %v603, 0
        %v629 = vand.u32 %v219, %v463
        %631 = vmatprep.subr.bf16.mxu0 0
        %632 = vmatpush1.bf16.msra.mxu0 %v629
        %633 = vmatprep.subr.bf16.mxu0 0
        %634 = vmatpush1.bf16.msra.mxu0 0
        %635 = vmatprep.subr.bf16.mxu0 0
        %636 = vmatpush1.bf16.msra.mxu0 0
        %637 = vmatprep.subr.bf16.mxu0 0
        %638 = vmatpush1.bf16.msra.mxu0 0
        %639 = vmatprep.subr.bf16.mxu0 0
        %640 = vmatpush1.bf16.msra.mxu0 0
        %641 = vmatprep.subr.bf16.mxu0 0
        %642 = vmatpush1.bf16.msra.mxu0 0
        %643 = vmatprep.subr.bf16.mxu0 0
        %644 = vmatpush1.bf16.msra.mxu0 0
        %645 = vmatprep.subr.bf16.mxu0 0
        %646 = vmatpush1.bf16.msra.mxu0 0
        %647 = vmatprep.subr.bf16.mxu0 0
        %648 = vmatpush1.bf16.msra.mxu0 0
        %649 = vmatprep.subr.bf16.mxu0 0
        %650 = vmatpush1.bf16.msra.mxu0 0
        %651 = vmatprep.subr.bf16.mxu0 0
        %652 = vmatpush1.bf16.msra.mxu0 0
        %653 = vmatprep.subr.bf16.mxu0 0
        %654 = vmatpush1.bf16.msra.mxu0 0
        %655 = vmatprep.subr.bf16.mxu0 0
        %656 = vmatpush1.bf16.msra.mxu0 0
        %657 = vmatprep.subr.bf16.mxu0 0
        %658 = vmatpush1.bf16.msra.mxu0 0
        %659 = vmatprep.subr.bf16.mxu0 0
        %660 = vmatpush1.bf16.msra.mxu0 0
        %661 = vmatprep.subr.bf16.mxu0 0
        %662 = vmatpush1.bf16.msra.mxu0 0
        %663 = vmatprep.mubr.bf16.mxu0 0
        %664 = vmatmul.mubr.bf16.gmra.mrb[0].mxu0 %v605
        %v665 = vpop.f32.mrb[0].mxu0
        %v666 = vadd.f32 %v502, %v665
        %v667 = vpop.f32.mrb[0].mxu0
        %v668 = vpop.f32.mrb[0].mxu0
        %v669 = vadd.f32 %v505, %v668
        %v670 = vpop.f32.mrb[0].mxu0
        %671 = vmatprep.mubr.bf16.mxu0 0
        %672 = vmatmul.mubr.bf16.gmra.mrb[0].mxu0 %v608
        %v673 = vpop.f32.mrb[0].mxu0
        %v674 = vadd.f32 %v510, %v673
        %v675 = vpop.f32.mrb[0].mxu0
        %v676 = vpop.f32.mrb[0].mxu0
        %v677 = vadd.f32 %v513, %v676
        %v678 = vpop.f32.mrb[0].mxu0
        %679 = vmatprep.mubr.bf16.mxu0 0
        %680 = vmatmul.mubr.bf16.gmra.mrb[0].mxu0 %v611
        %v681 = vpop.f32.mrb[0].mxu0
        %v682 = vadd.f32 %v518, %v681
        %v683 = vpop.f32.mrb[0].mxu0
        %v684 = vpop.f32.mrb[0].mxu0
        %v685 = vadd.f32 %v521, %v684
        %v686 = vpop.f32.mrb[0].mxu0
        %687 = vmatprep.mubr.bf16.mxu0 0
        %688 = vmatmul.mubr.bf16.gmra.mrb[0].mxu0 %v614
        %v689 = vpop.f32.mrb[0].mxu0
        %v690 = vadd.f32 %v526, %v689
        %v691 = vpop.f32.mrb[0].mxu0
        %v692 = vpop.f32.mrb[0].mxu0
        %v693 = vadd.f32 %v529, %v692
        %v694 = vpop.f32.mrb[0].mxu0
        %695 = vmatprep.mubr.bf16.mxu0 0
        %696 = vmatmul.mubr.bf16.gmra.mrb[0].mxu0 %v617
        %v697 = vpop.f32.mrb[0].mxu0
        %v698 = vadd.f32 %v534, %v697
        %v699 = vpop.f32.mrb[0].mxu0
        %v700 = vpop.f32.mrb[0].mxu0
        %v701 = vadd.f32 %v537, %v700
        %v702 = vpop.f32.mrb[0].mxu0
        %703 = vmatprep.mubr.bf16.mxu0 0
        %704 = vmatmul.mubr.bf16.gmra.mrb[0].mxu0 %v620
        %v705 = vpop.f32.mrb[0].mxu0
        %v706 = vadd.f32 %v542, %v705
        %v707 = vpop.f32.mrb[0].mxu0
        %v708 = vpop.f32.mrb[0].mxu0
        %v709 = vadd.f32 %v545, %v708
        %v710 = vpop.f32.mrb[0].mxu0
        %711 = vmatprep.mubr.bf16.mxu0 0
        %712 = vmatmul.mubr.bf16.gmra.mrb[0].mxu0 %v623
        %v713 = vpop.f32.mrb[0].mxu0
        %v714 = vadd.f32 %v550, %v713
        %v715 = vpop.f32.mrb[0].mxu0
        %v716 = vpop.f32.mrb[0].mxu0
        %v717 = vadd.f32 %v553, %v716
        %v718 = vpop.f32.mrb[0].mxu0
        %719 = vmatprep.mubr.bf16.mxu0 0
        %720 = vmatmul.mubr.bf16.gmra.mrb[0].mxu0 %v626
        %v721 = vpop.f32.mrb[0].mxu0
        %v722 = vadd.f32 %v558, %v721
        %v723 = vpop.f32.mrb[0].mxu0
        %v724 = vpop.f32.mrb[0].mxu0
        %v725 = vadd.f32 %v561, %v724
        %v726 = vpop.f32.mrb[0].mxu0
        %727 = vdwg.mxu0
        %vm732 = vcmask 1042432
        %vm733 = vcmask 1046532
        %vm734 = vmor %vm732, %vm733
        %v735 = vrot.slane %v189, 5
        %v736 = vrot.slane %v735, 4
        %v737 = vrot.slane %v190, 5
        %v738 = vsel %vm734, %v736, %v737
        %v739 = vrot.slane %v737, 4
        %v740 = vrot.slane %v191, 5
        %v741 = vsel %vm734, %v739, %v740
        %v742 = vrot.slane %v740, 4
        %v743 = vrot.slane %v192, 5
        %v744 = vsel %vm734, %v742, %v743
        %v745 = vrot.slane %v743, 4
        %v746 = vrot.slane %v193, 5
        %v747 = vsel %vm734, %v745, %v746
        %v748 = vrot.slane %v194, 5
        %v749 = vrot.slane %v748, 4
        %v750 = vrot.slane %v195, 5
        %v751 = vsel %vm734, %v749, %v750
        %v752 = vrot.slane %v750, 4
        %v753 = vrot.slane %v196, 5
        %v754 = vsel %vm734, %v752, %v753
        %v755 = vrot.slane %v753, 4
        %v756 = vrot.slane %v197, 5
        %v757 = vsel %vm734, %v755, %v756
        %v758 = vrot.slane %v756, 4
        %v759 = vrot.slane %v198, 5
        %v760 = vsel %vm734, %v758, %v759
        %v761 = vrot.slane %v199, 5
        %v762 = vrot.slane %v761, 4
        %v763 = vrot.slane %v200, 5
        %v764 = vsel %vm734, %v762, %v763
        %v765 = vrot.slane %v763, 4
        %v766 = vrot.slane %v201, 5
        %v767 = vsel %vm734, %v765, %v766
        %v768 = vrot.slane %v766, 4
        %v769 = vrot.slane %v202, 5
        %v770 = vsel %vm734, %v768, %v769
        %v771 = vrot.slane %v769, 4
        %v772 = vrot.slane %v203, 5
        %v773 = vsel %vm734, %v771, %v772
        %v774 = vrot.slane %v204, 5
        %v775 = vrot.slane %v774, 4
        %v776 = vrot.slane %v205, 5
        %v777 = vsel %vm734, %v775, %v776
        %v778 = vrot.slane %v776, 4
        %v779 = vrot.slane %v206, 5
        %v780 = vsel %vm734, %v778, %v779
        %v781 = vrot.slane %v779, 4
        %v782 = vrot.slane %v207, 5
        %v783 = vsel %vm734, %v781, %v782
        %v784 = vrot.slane %v782, 4
        %v785 = vrot.slane %v208, 5
        %v786 = vsel %vm734, %v784, %v785
        %v787 = vld [vmem:[%s1] sm:$0x8]
        %v788 = vld [vmem:[%s1 + $0x4] sm:$0x1]
        %v789 = vunpack.c.l.b16 %v738
        %v790 = vunpack.c.l.b16 %v741
        %v791 = vunpack.c.l.b16 %v744
        %v792 = vunpack.c.l.b16 %v747
        %v793 = vunpack.c.l.b16 %v751
        %v794 = vunpack.c.l.b16 %v754
        %v795 = vunpack.c.l.b16 %v757
        %v796 = vunpack.c.l.b16 %v760
        %v797 = vunpack.c.l.b16 %v764
        %v798 = vunpack.c.l.b16 %v767
        %v799 = vunpack.c.l.b16 %v770
        %v800 = vunpack.c.l.b16 %v773
        %v801 = vunpack.c.l.b16 %v777
        %v802 = vunpack.c.l.b16 %v780
        %v803 = vunpack.c.l.b16 %v783
        %v804 = vunpack.c.l.b16 %v786
        %v805 = vpack.c.b16 %v790, %v789
        %v806 = vpack.c.b16 %v792, %v791
        %v807 = vpack.c.b16 %v794, %v793
        %v808 = vpack.c.b16 %v796, %v795
        %v809 = vpack.c.b16 %v798, %v797
        %v810 = vpack.c.b16 %v800, %v799
        %v811 = vpack.c.b16 %v802, %v801
        %v812 = vpack.c.b16 %v804, %v803
        %v815 = vunpack.c.l.b16 %v787
        %v816 = vunpack.c.l.b16 %v788
        %v817 = vpack.c.b16 %v816, %v815
        %v818 = vrot.slane %v817, 3
        %v820 = vsel %vm435, %v805, 0
        %v823 = vsel %vm435, %v806, 0
        %v826 = vsel %vm435, %v807, 0
        %v829 = vsel %vm435, %v808, 0
        %v832 = vsel %vm435, %v809, 0
        %v835 = vsel %vm435, %v810, 0
        %v838 = vsel %vm435, %v811, 0
        %v841 = vsel %vm435, %v812, 0
        %v844 = vand.u32 %v818, %v463
        %846 = vmatprep.subr.bf16.mxu0 0
        %847 = vmatpush1.bf16.msra.mxu0 %v844
        %848 = vmatprep.subr.bf16.mxu0 0
        %849 = vmatpush1.bf16.msra.mxu0 0
        %850 = vmatprep.subr.bf16.mxu0 0
        %851 = vmatpush1.bf16.msra.mxu0 0
        %852 = vmatprep.subr.bf16.mxu0 0
        %853 = vmatpush1.bf16.msra.mxu0 0
        %854 = vmatprep.subr.bf16.mxu0 0
        %855 = vmatpush1.bf16.msra.mxu0 0
        %856 = vmatprep.subr.bf16.mxu0 0
        %857 = vmatpush1.bf16.msra.mxu0 0
        %858 = vmatprep.subr.bf16.mxu0 0
        %859 = vmatpush1.bf16.msra.mxu0 0
        %860 = vmatprep.subr.bf16.mxu0 0
        %861 = vmatpush1.bf16.msra.mxu0 0
        %862 = vmatprep.subr.bf16.mxu0 0
        %863 = vmatpush1.bf16.msra.mxu0 0
        %864 = vmatprep.subr.bf16.mxu0 0
        %865 = vmatpush1.bf16.msra.mxu0 0
        %866 = vmatprep.subr.bf16.mxu0 0
        %867 = vmatpush1.bf16.msra.mxu0 0
        %868 = vmatprep.subr.bf16.mxu0 0
        %869 = vmatpush1.bf16.msra.mxu0 0
        %870 = vmatprep.subr.bf16.mxu0 0
        %871 = vmatpush1.bf16.msra.mxu0 0
        %872 = vmatprep.subr.bf16.mxu0 0
        %873 = vmatpush1.bf16.msra.mxu0 0
        %874 = vmatprep.subr.bf16.mxu0 0
        %875 = vmatpush1.bf16.msra.mxu0 0
        %876 = vmatprep.subr.bf16.mxu0 0
        %877 = vmatpush1.bf16.msra.mxu0 0
        %878 = vmatprep.mubr.bf16.mxu0 0
        %879 = vmatmul.mubr.bf16.gmra.mrb[0].mxu0 %v820
        %v880 = vpop.f32.mrb[0].mxu0
        %v881 = vadd.f32 0.0, %v880
        %v882 = vpop.f32.mrb[0].mxu0
        %v883 = vpop.f32.mrb[0].mxu0
        %v884 = vadd.f32 0.0, %v883
        %v885 = vpop.f32.mrb[0].mxu0
        %886 = vmatprep.mubr.bf16.mxu0 0
        %887 = vmatmul.mubr.bf16.gmra.mrb[0].mxu0 %v823
        %v888 = vpop.f32.mrb[0].mxu0
        %v889 = vadd.f32 0.0, %v888
        %v890 = vpop.f32.mrb[0].mxu0
        %v891 = vpop.f32.mrb[0].mxu0
        %v892 = vadd.f32 0.0, %v891
        %v893 = vpop.f32.mrb[0].mxu0
        %894 = vmatprep.mubr.bf16.mxu0 0
        %895 = vmatmul.mubr.bf16.gmra.mrb[0].mxu0 %v826
        %v896 = vpop.f32.mrb[0].mxu0
        %v897 = vadd.f32 0.0, %v896
        %v898 = vpop.f32.mrb[0].mxu0
        %v899 = vpop.f32.mrb[0].mxu0
        %v900 = vadd.f32 0.0, %v899
        %v901 = vpop.f32.mrb[0].mxu0
        %902 = vmatprep.mubr.bf16.mxu0 0
        %903 = vmatmul.mubr.bf16.gmra.mrb[0].mxu0 %v829
        %v904 = vpop.f32.mrb[0].mxu0
        %v905 = vadd.f32 0.0, %v904
        %v906 = vpop.f32.mrb[0].mxu0
        %v907 = vpop.f32.mrb[0].mxu0
        %v908 = vadd.f32 0.0, %v907
        %v909 = vpop.f32.mrb[0].mxu0
        %910 = vmatprep.mubr.bf16.mxu0 0
        %911 = vmatmul.mubr.bf16.gmra.mrb[0].mxu0 %v832
        %v912 = vpop.f32.mrb[0].mxu0
        %v913 = vadd.f32 0.0, %v912
        %v914 = vpop.f32.mrb[0].mxu0
        %v915 = vpop.f32.mrb[0].mxu0
        %v916 = vadd.f32 0.0, %v915
        %v917 = vpop.f32.mrb[0].mxu0
        %918 = vmatprep.mubr.bf16.mxu0 0
        %919 = vmatmul.mubr.bf16.gmra.mrb[0].mxu0 %v835
        %v920 = vpop.f32.mrb[0].mxu0
        %v921 = vadd.f32 0.0, %v920
        %v922 = vpop.f32.mrb[0].mxu0
        %v923 = vpop.f32.mrb[0].mxu0
        %v924 = vadd.f32 0.0, %v923
        %v925 = vpop.f32.mrb[0].mxu0
        %926 = vmatprep.mubr.bf16.mxu0 0
        %927 = vmatmul.mubr.bf16.gmra.mrb[0].mxu0 %v838
        %v928 = vpop.f32.mrb[0].mxu0
        %v929 = vadd.f32 0.0, %v928
        %v930 = vpop.f32.mrb[0].mxu0
        %v931 = vpop.f32.mrb[0].mxu0
        %v932 = vadd.f32 0.0, %v931
        %v933 = vpop.f32.mrb[0].mxu0
        %934 = vmatprep.mubr.bf16.mxu0 0
        %935 = vmatmul.mubr.bf16.gmra.mrb[0].mxu0 %v841
        %v936 = vpop.f32.mrb[0].mxu0
        %v937 = vadd.f32 0.0, %v936
        %v938 = vpop.f32.mrb[0].mxu0
        %v939 = vpop.f32.mrb[0].mxu0
        %v940 = vadd.f32 0.0, %v939
        %v941 = vpop.f32.mrb[0].mxu0
        %942 = vdwg.mxu0
        %v943 = vadd.f32 %v666, %v881
        %v944 = vadd.f32 %v669, %v884
        %v945 = vadd.f32 %v674, %v889
        %v946 = vadd.f32 %v677, %v892
        %v947 = vadd.f32 %v682, %v897
        %v948 = vadd.f32 %v685, %v900
        %v949 = vadd.f32 %v690, %v905
        %v950 = vadd.f32 %v693, %v908
        %v951 = vadd.f32 %v698, %v913
        %v952 = vadd.f32 %v701, %v916
        %v953 = vadd.f32 %v706, %v921
        %v954 = vadd.f32 %v709, %v924
        %v955 = vadd.f32 %v714, %v929
        %v956 = vadd.f32 %v717, %v932
        %v957 = vadd.f32 %v722, %v937
        %v958 = vadd.f32 %v725, %v940
        %v959 = vld [vmem:[%s1 + $0x4] sm:$0x3]
        %v964 = vunpack.c.l.b16 %v209
        %v965 = vunpack.c.l.b16 %v210
        %v966 = vunpack.c.l.b16 %v211
        %v967 = vunpack.c.l.b16 %v212
        %v968 = vpack.c.b16 %v965, %v964
        %v969 = vpack.c.b16 %v967, %v966
        %v971 = vunpack.c.l.b16 %v959
        %v972 = vpack.c.b16 %v971, %v971
        %v974 = vshrl.u32 %v972, 16
        %v976 = vshll.u32 %v972, 16
        %v978 = vrot.slane %v976, 1
        %v979 = vor.u32 %v974, %v978
        %v981 = vsel %vm435, %v968, 0
        %v984 = vsel %vm435, %v969, 0
        %v987 = vand.u32 %v979, %v463
        %989 = vmatprep.subr.bf16.mxu0 0
        %990 = vmatpush1.bf16.msra.mxu0 %v987
        %991 = vmatprep.subr.bf16.mxu0 0
        %992 = vmatpush1.bf16.msra.mxu0 0
        %993 = vmatprep.subr.bf16.mxu0 0
        %994 = vmatpush1.bf16.msra.mxu0 0
        %995 = vmatprep.subr.bf16.mxu0 0
        %996 = vmatpush1.bf16.msra.mxu0 0
        %997 = vmatprep.subr.bf16.mxu0 0
        %998 = vmatpush1.bf16.msra.mxu0 0
        %999 = vmatprep.subr.bf16.mxu0 0
        %1000 = vmatpush1.bf16.msra.mxu0 0
        %1001 = vmatprep.subr.bf16.mxu0 0
        %1002 = vmatpush1.bf16.msra.mxu0 0
        %1003 = vmatprep.subr.bf16.mxu0 0
        %1004 = vmatpush1.bf16.msra.mxu0 0
        %1005 = vmatprep.subr.bf16.mxu0 0
        %1006 = vmatpush1.bf16.msra.mxu0 0
        %1007 = vmatprep.subr.bf16.mxu0 0
        %1008 = vmatpush1.bf16.msra.mxu0 0
        %1009 = vmatprep.subr.bf16.mxu0 0
        %1010 = vmatpush1.bf16.msra.mxu0 0
        %1011 = vmatprep.subr.bf16.mxu0 0
        %1012 = vmatpush1.bf16.msra.mxu0 0
        %1013 = vmatprep.subr.bf16.mxu0 0
        %1014 = vmatpush1.bf16.msra.mxu0 0
        %1015 = vmatprep.subr.bf16.mxu0 0
        %1016 = vmatpush1.bf16.msra.mxu0 0
        %1017 = vmatprep.subr.bf16.mxu0 0
        %1018 = vmatpush1.bf16.msra.mxu0 0
        %1019 = vmatprep.subr.bf16.mxu0 0
        %1020 = vmatpush1.bf16.msra.mxu0 0
        %1021 = vmatprep.mubr.bf16.mxu0 0
        %1022 = vmatmul.mubr.bf16.gmra.mrb[0].mxu0 %v611
        %v1023 = vpop.f32.mrb[0].mxu0
        %v1024 = vadd.f32 0.0, %v1023
        %v1025 = vpop.f32.mrb[0].mxu0
        %v1026 = vpop.f32.mrb[0].mxu0
        %v1027 = vadd.f32 0.0, %v1026
        %v1028 = vpop.f32.mrb[0].mxu0
        %1029 = vmatprep.mubr.bf16.mxu0 0
        %1030 = vmatmul.mubr.bf16.gmra.mrb[0].mxu0 %v614
        %v1031 = vpop.f32.mrb[0].mxu0
        %v1032 = vadd.f32 0.0, %v1031
        %v1033 = vpop.f32.mrb[0].mxu0
        %v1034 = vpop.f32.mrb[0].mxu0
        %v1035 = vadd.f32 0.0, %v1034
        %v1036 = vpop.f32.mrb[0].mxu0
        %1037 = vmatprep.mubr.bf16.mxu0 0
        %1038 = vmatmul.mubr.bf16.gmra.mrb[0].mxu0 %v617
        %v1039 = vpop.f32.mrb[0].mxu0
        %v1040 = vadd.f32 0.0, %v1039
        %v1041 = vpop.f32.mrb[0].mxu0
        %v1042 = vpop.f32.mrb[0].mxu0
        %v1043 = vadd.f32 0.0, %v1042
        %v1044 = vpop.f32.mrb[0].mxu0
        %1045 = vmatprep.mubr.bf16.mxu0 0
        %1046 = vmatmul.mubr.bf16.gmra.mrb[0].mxu0 %v620
        %v1047 = vpop.f32.mrb[0].mxu0
        %v1048 = vadd.f32 0.0, %v1047
        %v1049 = vpop.f32.mrb[0].mxu0
        %v1050 = vpop.f32.mrb[0].mxu0
        %v1051 = vadd.f32 0.0, %v1050
        %v1052 = vpop.f32.mrb[0].mxu0
        %1053 = vmatprep.mubr.bf16.mxu0 0
        %1054 = vmatmul.mubr.bf16.gmra.mrb[0].mxu0 %v623
        %v1055 = vpop.f32.mrb[0].mxu0
        %v1056 = vadd.f32 0.0, %v1055
        %v1057 = vpop.f32.mrb[0].mxu0
        %v1058 = vpop.f32.mrb[0].mxu0
        %v1059 = vadd.f32 0.0, %v1058
        %v1060 = vpop.f32.mrb[0].mxu0
        %1061 = vmatprep.mubr.bf16.mxu0 0
        %1062 = vmatmul.mubr.bf16.gmra.mrb[0].mxu0 %v626
        %v1063 = vpop.f32.mrb[0].mxu0
        %v1064 = vadd.f32 0.0, %v1063
        %v1065 = vpop.f32.mrb[0].mxu0
        %v1066 = vpop.f32.mrb[0].mxu0
        %v1067 = vadd.f32 0.0, %v1066
        %v1068 = vpop.f32.mrb[0].mxu0
        %1069 = vmatprep.mubr.bf16.mxu0 0
        %1070 = vmatmul.mubr.bf16.gmra.mrb[0].mxu0 %v981
        %v1071 = vpop.f32.mrb[0].mxu0
        %v1072 = vadd.f32 0.0, %v1071
        %v1073 = vpop.f32.mrb[0].mxu0
        %v1074 = vpop.f32.mrb[0].mxu0
        %v1075 = vadd.f32 0.0, %v1074
        %v1076 = vpop.f32.mrb[0].mxu0
        %1077 = vmatprep.mubr.bf16.mxu0 0
        %1078 = vmatmul.mubr.bf16.gmra.mrb[0].mxu0 %v984
        %v1079 = vpop.f32.mrb[0].mxu0
        %v1080 = vadd.f32 0.0, %v1079
        %v1081 = vpop.f32.mrb[0].mxu0
        %v1082 = vpop.f32.mrb[0].mxu0
        %v1083 = vadd.f32 0.0, %v1082
        %v1084 = vpop.f32.mrb[0].mxu0
        %1085 = vdwg.mxu0
        %v1086 = vadd.f32 %v943, %v1024
        %v1087 = vadd.f32 %v944, %v1027
        %v1088 = vadd.f32 %v945, %v1032
        %v1089 = vadd.f32 %v946, %v1035
        %v1090 = vadd.f32 %v947, %v1040
        %v1091 = vadd.f32 %v948, %v1043
        %v1092 = vadd.f32 %v949, %v1048
        %v1093 = vadd.f32 %v950, %v1051
        %v1094 = vadd.f32 %v951, %v1056
        %v1095 = vadd.f32 %v952, %v1059
        %v1096 = vadd.f32 %v953, %v1064
        %v1097 = vadd.f32 %v954, %v1067
        %v1098 = vadd.f32 %v955, %v1072
        %v1099 = vadd.f32 %v956, %v1075
        %v1100 = vadd.f32 %v957, %v1080
        %v1101 = vadd.f32 %v958, %v1083
        %v1103 = vshrl.u32 %v209, 16
        %v1105 = vrot.slane %v1103, 4
        %v1106 = vshll.u32 %v209, 16
        %v1108 = vrot.slane %v1106, 5
        %v1109 = vor.u32 %v1105, %v1108
        %v1110 = vrot.slane %v1109, 4
        %v1112 = vshll.u32 %v210, 16
        %v1114 = vrot.slane %v1112, 5
        %v1115 = vsel %vm222, %v1110, %v1114
        %v1116 = vshrl.u32 %v210, 16
        %v1118 = vrot.slane %v1116, 4
        %v1119 = vor.u32 %v1118, %v1114
        %v1120 = vrot.slane %v1119, 4
        %v1122 = vshll.u32 %v211, 16
        %v1124 = vrot.slane %v1122, 5
        %v1125 = vsel %vm222, %v1120, %v1124
        %v1126 = vshrl.u32 %v211, 16
        %v1128 = vrot.slane %v1126, 4
        %v1129 = vor.u32 %v1128, %v1124
        %v1130 = vrot.slane %v1129, 4
        %v1132 = vshll.u32 %v212, 16
        %v1134 = vrot.slane %v1132, 5
        %v1135 = vsel %vm222, %v1130, %v1134
        %v1136 = vshrl.u32 %v212, 16
        %v1138 = vrot.slane %v1136, 4
        %v1139 = vor.u32 %v1138, %v1134
        %v1140 = vrot.slane %v1139, 4
        %v1142 = vshll.u32 %v213, 16
        %v1144 = vrot.slane %v1142, 5
        %v1145 = vsel %vm222, %v1140, %v1144
        %v1146 = vld [vmem:[%s1 + $0x4] sm:$0xc]
        %v1147 = vunpack.c.l.b16 %v1115
        %v1148 = vunpack.c.l.b16 %v1125
        %v1149 = vunpack.c.l.b16 %v1135
        %v1150 = vunpack.c.l.b16 %v1145
        %v1151 = vpack.c.b16 %v1148, %v1147
        %v1152 = vpack.c.b16 %v1150, %v1149
        %v1154 = vunpack.c.l.b16 %v1146
        %v1155 = vpack.c.b16 %v1154, %v1154
        %v1156 = vrot.slane %v1155, 2
        %v1158 = vsel %vm435, %v1151, 0
        %v1161 = vsel %vm435, %v1152, 0
        %v1164 = vand.u32 %v1156, %v463
        %1166 = vmatprep.subr.bf16.mxu0 0
        %1167 = vmatpush1.bf16.msra.mxu0 %v1164
        %1168 = vmatprep.subr.bf16.mxu0 0
        %1169 = vmatpush1.bf16.msra.mxu0 0
        %1170 = vmatprep.subr.bf16.mxu0 0
        %1171 = vmatpush1.bf16.msra.mxu0 0
        %1172 = vmatprep.subr.bf16.mxu0 0
        %1173 = vmatpush1.bf16.msra.mxu0 0
        %1174 = vmatprep.subr.bf16.mxu0 0
        %1175 = vmatpush1.bf16.msra.mxu0 0
        %1176 = vmatprep.subr.bf16.mxu0 0
        %1177 = vmatpush1.bf16.msra.mxu0 0
        %1178 = vmatprep.subr.bf16.mxu0 0
        %1179 = vmatpush1.bf16.msra.mxu0 0
        %1180 = vmatprep.subr.bf16.mxu0 0
        %1181 = vmatpush1.bf16.msra.mxu0 0
        %1182 = vmatprep.subr.bf16.mxu0 0
        %1183 = vmatpush1.bf16.msra.mxu0 0
        %1184 = vmatprep.subr.bf16.mxu0 0
        %1185 = vmatpush1.bf16.msra.mxu0 0
        %1186 = vmatprep.subr.bf16.mxu0 0
        %1187 = vmatpush1.bf16.msra.mxu0 0
        %1188 = vmatprep.subr.bf16.mxu0 0
        %1189 = vmatpush1.bf16.msra.mxu0 0
        %1190 = vmatprep.subr.bf16.mxu0 0
        %1191 = vmatpush1.bf16.msra.mxu0 0
        %1192 = vmatprep.subr.bf16.mxu0 0
        %1193 = vmatpush1.bf16.msra.mxu0 0
        %1194 = vmatprep.subr.bf16.mxu0 0
        %1195 = vmatpush1.bf16.msra.mxu0 0
        %1196 = vmatprep.subr.bf16.mxu0 0
        %1197 = vmatpush1.bf16.msra.mxu0 0
        %1198 = vmatprep.mubr.bf16.mxu0 0
        %1199 = vmatmul.mubr.bf16.gmra.mrb[0].mxu0 %v443
        %v1200 = vpop.f32.mrb[0].mxu0
        %v1201 = vadd.f32 0.0, %v1200
        %v1202 = vpop.f32.mrb[0].mxu0
        %v1203 = vpop.f32.mrb[0].mxu0
        %v1204 = vadd.f32 0.0, %v1203
        %v1205 = vpop.f32.mrb[0].mxu0
        %1206 = vmatprep.mubr.bf16.mxu0 0
        %1207 = vmatmul.mubr.bf16.gmra.mrb[0].mxu0 %v446
        %v1208 = vpop.f32.mrb[0].mxu0
        %v1209 = vadd.f32 0.0, %v1208
        %v1210 = vpop.f32.mrb[0].mxu0
        %v1211 = vpop.f32.mrb[0].mxu0
        %v1212 = vadd.f32 0.0, %v1211
        %v1213 = vpop.f32.mrb[0].mxu0
        %1214 = vmatprep.mubr.bf16.mxu0 0
        %1215 = vmatmul.mubr.bf16.gmra.mrb[0].mxu0 %v449
        %v1216 = vpop.f32.mrb[0].mxu0
        %v1217 = vadd.f32 0.0, %v1216
        %v1218 = vpop.f32.mrb[0].mxu0
        %v1219 = vpop.f32.mrb[0].mxu0
        %v1220 = vadd.f32 0.0, %v1219
        %v1221 = vpop.f32.mrb[0].mxu0
        %1222 = vmatprep.mubr.bf16.mxu0 0
        %1223 = vmatmul.mubr.bf16.gmra.mrb[0].mxu0 %v452
        %v1224 = vpop.f32.mrb[0].mxu0
        %v1225 = vadd.f32 0.0, %v1224
        %v1226 = vpop.f32.mrb[0].mxu0
        %v1227 = vpop.f32.mrb[0].mxu0
        %v1228 = vadd.f32 0.0, %v1227
        %v1229 = vpop.f32.mrb[0].mxu0
        %1230 = vmatprep.mubr.bf16.mxu0 0
        %1231 = vmatmul.mubr.bf16.gmra.mrb[0].mxu0 %v455
        %v1232 = vpop.f32.mrb[0].mxu0
        %v1233 = vadd.f32 0.0, %v1232
        %v1234 = vpop.f32.mrb[0].mxu0
        %v1235 = vpop.f32.mrb[0].mxu0
        %v1236 = vadd.f32 0.0, %v1235
        %v1237 = vpop.f32.mrb[0].mxu0
        %1238 = vmatprep.mubr.bf16.mxu0 0
        %1239 = vmatmul.mubr.bf16.gmra.mrb[0].mxu0 %v458
        %v1240 = vpop.f32.mrb[0].mxu0
        %v1241 = vadd.f32 0.0, %v1240
        %v1242 = vpop.f32.mrb[0].mxu0
        %v1243 = vpop.f32.mrb[0].mxu0
        %v1244 = vadd.f32 0.0, %v1243
        %v1245 = vpop.f32.mrb[0].mxu0
        %1246 = vmatprep.mubr.bf16.mxu0 0
        %1247 = vmatmul.mubr.bf16.gmra.mrb[0].mxu0 %v1158
        %v1248 = vpop.f32.mrb[0].mxu0
        %v1249 = vadd.f32 0.0, %v1248
        %v1250 = vpop.f32.mrb[0].mxu0
        %v1251 = vpop.f32.mrb[0].mxu0
        %v1252 = vadd.f32 0.0, %v1251
        %v1253 = vpop.f32.mrb[0].mxu0
        %1254 = vmatprep.mubr.bf16.mxu0 0
        %1255 = vmatmul.mubr.bf16.gmra.mrb[0].mxu0 %v1161
        %v1256 = vpop.f32.mrb[0].mxu0
        %v1257 = vadd.f32 0.0, %v1256
        %v1258 = vpop.f32.mrb[0].mxu0
        %v1259 = vpop.f32.mrb[0].mxu0
        %v1260 = vadd.f32 0.0, %v1259
        %v1261 = vpop.f32.mrb[0].mxu0
        %1262 = vdwg.mxu0
        %v1263 = vadd.f32 %v1086, %v1201
        %v1264 = vadd.f32 %v1087, %v1204
        %v1265 = vadd.f32 %v1088, %v1209
        %v1266 = vadd.f32 %v1089, %v1212
        %v1267 = vadd.f32 %v1090, %v1217
        %v1268 = vadd.f32 %v1091, %v1220
        %v1269 = vadd.f32 %v1092, %v1225
        %v1270 = vadd.f32 %v1093, %v1228
        %v1271 = vadd.f32 %v1094, %v1233
        %v1272 = vadd.f32 %v1095, %v1236
        %v1273 = vadd.f32 %v1096, %v1241
        %v1274 = vadd.f32 %v1097, %v1244
        %v1275 = vadd.f32 %v1098, %v1249
        %v1276 = vadd.f32 %v1099, %v1252
        %v1277 = vadd.f32 %v1100, %v1257
        %v1278 = vadd.f32 %v1101, %v1260
        %v1280 = vrot.slane %v209, 5
        %v1281 = vrot.slane %v1280, 4
        %v1282 = vrot.slane %v210, 5
        %v1283 = vsel %vm734, %v1281, %v1282
        %v1284 = vrot.slane %v1282, 4
        %v1285 = vrot.slane %v211, 5
        %v1286 = vsel %vm734, %v1284, %v1285
        %v1287 = vrot.slane %v1285, 4
        %v1288 = vrot.slane %v212, 5
        %v1289 = vsel %vm734, %v1287, %v1288
        %v1290 = vrot.slane %v1288, 4
        %v1291 = vrot.slane %v213, 5
        %v1292 = vsel %vm734, %v1290, %v1291
        %v1293 = vld [vmem:[%s1 + $0x4] sm:$0x8]
        %v1294 = vld [vmem:[%s1 + $0x8] sm:$0x1]
        %v1295 = vunpack.c.l.b16 %v1283
        %v1296 = vunpack.c.l.b16 %v1286
        %v1297 = vunpack.c.l.b16 %v1289
        %v1298 = vunpack.c.l.b16 %v1292
        %v1299 = vpack.c.b16 %v1296, %v1295
        %v1300 = vpack.c.b16 %v1298, %v1297
        %v1303 = vunpack.c.l.b16 %v1293
        %v1304 = vunpack.c.l.b16 %v1294
        %v1305 = vpack.c.b16 %v1304, %v1303
        %v1307 = vshrl.u32 %v1305, 16
        %v1309 = vrot.slane %v1307, 3
        %v1310 = vshll.u32 %v1305, 16
        %v1312 = vrot.slane %v1310, 4
        %v1313 = vor.u32 %v1309, %v1312
        %v1315 = vsel %vm435, %v1299, 0
        %v1318 = vsel %vm435, %v1300, 0
        %v1321 = vand.u32 %v1313, %v463
        %1323 = vmatprep.subr.bf16.mxu0 0
        %1324 = vmatpush1.bf16.msra.mxu0 %v1321
        %1325 = vmatprep.subr.bf16.mxu0 0
        %1326 = vmatpush1.bf16.msra.mxu0 0
        %1327 = vmatprep.subr.bf16.mxu0 0
        %1328 = vmatpush1.bf16.msra.mxu0 0
        %1329 = vmatprep.subr.bf16.mxu0 0
        %1330 = vmatpush1.bf16.msra.mxu0 0
        %1331 = vmatprep.subr.bf16.mxu0 0
        %1332 = vmatpush1.bf16.msra.mxu0 0
        %1333 = vmatprep.subr.bf16.mxu0 0
        %1334 = vmatpush1.bf16.msra.mxu0 0
        %1335 = vmatprep.subr.bf16.mxu0 0
        %1336 = vmatpush1.bf16.msra.mxu0 0
        %1337 = vmatprep.subr.bf16.mxu0 0
        %1338 = vmatpush1.bf16.msra.mxu0 0
        %1339 = vmatprep.subr.bf16.mxu0 0
        %1340 = vmatpush1.bf16.msra.mxu0 0
        %1341 = vmatprep.subr.bf16.mxu0 0
        %1342 = vmatpush1.bf16.msra.mxu0 0
        %1343 = vmatprep.subr.bf16.mxu0 0
        %1344 = vmatpush1.bf16.msra.mxu0 0
        %1345 = vmatprep.subr.bf16.mxu0 0
        %1346 = vmatpush1.bf16.msra.mxu0 0
        %1347 = vmatprep.subr.bf16.mxu0 0
        %1348 = vmatpush1.bf16.msra.mxu0 0
        %1349 = vmatprep.subr.bf16.mxu0 0
        %1350 = vmatpush1.bf16.msra.mxu0 0
        %1351 = vmatprep.subr.bf16.mxu0 0
        %1352 = vmatpush1.bf16.msra.mxu0 0
        %1353 = vmatprep.subr.bf16.mxu0 0
        %1354 = vmatpush1.bf16.msra.mxu0 0
        %1355 = vmatprep.mubr.bf16.mxu0 0
        %1356 = vmatmul.mubr.bf16.gmra.mrb[0].mxu0 %v826
        %v1357 = vpop.f32.mrb[0].mxu0
        %v1358 = vadd.f32 0.0, %v1357
        %v1359 = vpop.f32.mrb[0].mxu0
        %v1360 = vpop.f32.mrb[0].mxu0
        %v1361 = vadd.f32 0.0, %v1360
        %v1362 = vpop.f32.mrb[0].mxu0
        %1363 = vmatprep.mubr.bf16.mxu0 0
        %1364 = vmatmul.mubr.bf16.gmra.mrb[0].mxu0 %v829
        %v1365 = vpop.f32.mrb[0].mxu0
        %v1366 = vadd.f32 0.0, %v1365
        %v1367 = vpop.f32.mrb[0].mxu0
        %v1368 = vpop.f32.mrb[0].mxu0
        %v1369 = vadd.f32 0.0, %v1368
        %v1370 = vpop.f32.mrb[0].mxu0
        %1371 = vmatprep.mubr.bf16.mxu0 0
        %1372 = vmatmul.mubr.bf16.gmra.mrb[0].mxu0 %v832
        %v1373 = vpop.f32.mrb[0].mxu0
        %v1374 = vadd.f32 0.0, %v1373
        %v1375 = vpop.f32.mrb[0].mxu0
        %v1376 = vpop.f32.mrb[0].mxu0
        %v1377 = vadd.f32 0.0, %v1376
        %v1378 = vpop.f32.mrb[0].mxu0
        %1379 = vmatprep.mubr.bf16.mxu0 0
        %1380 = vmatmul.mubr.bf16.gmra.mrb[0].mxu0 %v835
        %v1381 = vpop.f32.mrb[0].mxu0
        %v1382 = vadd.f32 0.0, %v1381
        %v1383 = vpop.f32.mrb[0].mxu0
        %v1384 = vpop.f32.mrb[0].mxu0
        %v1385 = vadd.f32 0.0, %v1384
        %v1386 = vpop.f32.mrb[0].mxu0
        %1387 = vmatprep.mubr.bf16.mxu0 0
        %1388 = vmatmul.mubr.bf16.gmra.mrb[0].mxu0 %v838
        %v1389 = vpop.f32.mrb[0].mxu0
        %v1390 = vadd.f32 0.0, %v1389
        %v1391 = vpop.f32.mrb[0].mxu0
        %v1392 = vpop.f32.mrb[0].mxu0
        %v1393 = vadd.f32 0.0, %v1392
        %v1394 = vpop.f32.mrb[0].mxu0
        %1395 = vmatprep.mubr.bf16.mxu0 0
        %1396 = vmatmul.mubr.bf16.gmra.mrb[0].mxu0 %v841
        %v1397 = vpop.f32.mrb[0].mxu0
        %v1398 = vadd.f32 0.0, %v1397
        %v1399 = vpop.f32.mrb[0].mxu0
        %v1400 = vpop.f32.mrb[0].mxu0
        %v1401 = vadd.f32 0.0, %v1400
        %v1402 = vpop.f32.mrb[0].mxu0
        %1403 = vmatprep.mubr.bf16.mxu0 0
        %1404 = vmatmul.mubr.bf16.gmra.mrb[0].mxu0 %v1315
        %v1405 = vpop.f32.mrb[0].mxu0
        %v1406 = vadd.f32 0.0, %v1405
        %v1407 = vpop.f32.mrb[0].mxu0
        %v1408 = vpop.f32.mrb[0].mxu0
        %v1409 = vadd.f32 0.0, %v1408
        %v1410 = vpop.f32.mrb[0].mxu0
        %1411 = vmatprep.mubr.bf16.mxu0 0
        %1412 = vmatmul.mubr.bf16.gmra.mrb[0].mxu0 %v1318
        %v1413 = vpop.f32.mrb[0].mxu0
        %v1414 = vadd.f32 0.0, %v1413
        %v1415 = vpop.f32.mrb[0].mxu0
        %v1416 = vpop.f32.mrb[0].mxu0
        %v1417 = vadd.f32 0.0, %v1416
        %v1418 = vpop.f32.mrb[0].mxu0
        %1419 = vdwg.mxu0
        %v1420 = vadd.f32 %v1263, %v1358
        %v1421 = vadd.f32 %v1264, %v1361
        %v1422 = vadd.f32 %v1265, %v1366
        %v1423 = vadd.f32 %v1266, %v1369
        %v1424 = vadd.f32 %v1267, %v1374
        %v1425 = vadd.f32 %v1268, %v1377
        %v1426 = vadd.f32 %v1269, %v1382
        %v1427 = vadd.f32 %v1270, %v1385
        %v1428 = vadd.f32 %v1271, %v1390
        %v1429 = vadd.f32 %v1272, %v1393
        %v1430 = vadd.f32 %v1273, %v1398
        %v1431 = vadd.f32 %v1274, %v1401
        %v1432 = vadd.f32 %v1275, %v1406
        %v1433 = vadd.f32 %v1276, %v1409
        %v1434 = vadd.f32 %v1277, %v1414
        %v1435 = vadd.f32 %v1278, %v1417
        %v1436 = vld [vmem:[%s1 + $0x8] sm:$0x6]
        %v1441 = vunpack.c.l.b16 %v214
        %v1442 = vunpack.c.l.b16 %v215
        %v1443 = vunpack.c.l.b16 %v216
        %v1444 = vunpack.c.l.b16 %v217
        %v1445 = vpack.c.b16 %v1442, %v1441
        %v1446 = vpack.c.b16 %v1444, %v1443
        %v1448 = vunpack.c.l.b16 %v1436
        %v1449 = vpack.c.b16 %v1448, %v1448
        %v1450 = vrot.slane %v1449, 1
        %v1452 = vsel %vm435, %v1445, 0
        %v1455 = vsel %vm435, %v1446, 0
        %v1458 = vand.u32 %v1450, %v463
        %1460 = vmatprep.subr.bf16.mxu0 0
        %1461 = vmatpush1.bf16.msra.mxu0 %v1458
        %1462 = vmatprep.subr.bf16.mxu0 0
        %1463 = vmatpush1.bf16.msra.mxu0 0
        %1464 = vmatprep.subr.bf16.mxu0 0
        %1465 = vmatpush1.bf16.msra.mxu0 0
        %1466 = vmatprep.subr.bf16.mxu0 0
        %1467 = vmatpush1.bf16.msra.mxu0 0
        %1468 = vmatprep.subr.bf16.mxu0 0
        %1469 = vmatpush1.bf16.msra.mxu0 0
        %1470 = vmatprep.subr.bf16.mxu0 0
        %1471 = vmatpush1.bf16.msra.mxu0 0
        %1472 = vmatprep.subr.bf16.mxu0 0
        %1473 = vmatpush1.bf16.msra.mxu0 0
        %1474 = vmatprep.subr.bf16.mxu0 0
        %1475 = vmatpush1.bf16.msra.mxu0 0
        %1476 = vmatprep.subr.bf16.mxu0 0
        %1477 = vmatpush1.bf16.msra.mxu0 0
        %1478 = vmatprep.subr.bf16.mxu0 0
        %1479 = vmatpush1.bf16.msra.mxu0 0
        %1480 = vmatprep.subr.bf16.mxu0 0
        %1481 = vmatpush1.bf16.msra.mxu0 0
        %1482 = vmatprep.subr.bf16.mxu0 0
        %1483 = vmatpush1.bf16.msra.mxu0 0
        %1484 = vmatprep.subr.bf16.mxu0 0
        %1485 = vmatpush1.bf16.msra.mxu0 0
        %1486 = vmatprep.subr.bf16.mxu0 0
        %1487 = vmatpush1.bf16.msra.mxu0 0
        %1488 = vmatprep.subr.bf16.mxu0 0
        %1489 = vmatpush1.bf16.msra.mxu0 0
        %1490 = vmatprep.subr.bf16.mxu0 0
        %1491 = vmatpush1.bf16.msra.mxu0 0
        %1492 = vmatprep.mubr.bf16.mxu0 0
        %1493 = vmatmul.mubr.bf16.gmra.mrb[0].mxu0 %v617
        %v1494 = vpop.f32.mrb[0].mxu0
        %v1495 = vadd.f32 0.0, %v1494
        %v1496 = vpop.f32.mrb[0].mxu0
        %v1497 = vpop.f32.mrb[0].mxu0
        %v1498 = vadd.f32 0.0, %v1497
        %v1499 = vpop.f32.mrb[0].mxu0
        %1500 = vmatprep.mubr.bf16.mxu0 0
        %1501 = vmatmul.mubr.bf16.gmra.mrb[0].mxu0 %v620
        %v1502 = vpop.f32.mrb[0].mxu0
        %v1503 = vadd.f32 0.0, %v1502
        %v1504 = vpop.f32.mrb[0].mxu0
        %v1505 = vpop.f32.mrb[0].mxu0
        %v1506 = vadd.f32 0.0, %v1505
        %v1507 = vpop.f32.mrb[0].mxu0
        %1508 = vmatprep.mubr.bf16.mxu0 0
        %1509 = vmatmul.mubr.bf16.gmra.mrb[0].mxu0 %v623
        %v1510 = vpop.f32.mrb[0].mxu0
        %v1511 = vadd.f32 0.0, %v1510
        %v1512 = vpop.f32.mrb[0].mxu0
        %v1513 = vpop.f32.mrb[0].mxu0
        %v1514 = vadd.f32 0.0, %v1513
        %v1515 = vpop.f32.mrb[0].mxu0
        %1516 = vmatprep.mubr.bf16.mxu0 0
        %1517 = vmatmul.mubr.bf16.gmra.mrb[0].mxu0 %v626
        %v1518 = vpop.f32.mrb[0].mxu0
        %v1519 = vadd.f32 0.0, %v1518
        %v1520 = vpop.f32.mrb[0].mxu0
        %v1521 = vpop.f32.mrb[0].mxu0
        %v1522 = vadd.f32 0.0, %v1521
        %v1523 = vpop.f32.mrb[0].mxu0
        %1524 = vmatprep.mubr.bf16.mxu0 0
        %1525 = vmatmul.mubr.bf16.gmra.mrb[0].mxu0 %v981
        %v1526 = vpop.f32.mrb[0].mxu0
        %v1527 = vadd.f32 0.0, %v1526
        %v1528 = vpop.f32.mrb[0].mxu0
        %v1529 = vpop.f32.mrb[0].mxu0
        %v1530 = vadd.f32 0.0, %v1529
        %v1531 = vpop.f32.mrb[0].mxu0
        %1532 = vmatprep.mubr.bf16.mxu0 0
        %1533 = vmatmul.mubr.bf16.gmra.mrb[0].mxu0 %v984
        %v1534 = vpop.f32.mrb[0].mxu0
        %v1535 = vadd.f32 0.0, %v1534
        %v1536 = vpop.f32.mrb[0].mxu0
        %v1537 = vpop.f32.mrb[0].mxu0
        %v1538 = vadd.f32 0.0, %v1537
        %v1539 = vpop.f32.mrb[0].mxu0
        %1540 = vmatprep.mubr.bf16.mxu0 0
        %1541 = vmatmul.mubr.bf16.gmra.mrb[0].mxu0 %v1452
        %v1542 = vpop.f32.mrb[0].mxu0
        %v1543 = vadd.f32 0.0, %v1542
        %v1544 = vpop.f32.mrb[0].mxu0
        %v1545 = vpop.f32.mrb[0].mxu0
        %v1546 = vadd.f32 0.0, %v1545
        %v1547 = vpop.f32.mrb[0].mxu0
        %1548 = vmatprep.mubr.bf16.mxu0 0
        %1549 = vmatmul.mubr.bf16.gmra.mrb[0].mxu0 %v1455
        %v1550 = vpop.f32.mrb[0].mxu0
        %v1551 = vadd.f32 0.0, %v1550
        %v1552 = vpop.f32.mrb[0].mxu0
        %v1553 = vpop.f32.mrb[0].mxu0
        %v1554 = vadd.f32 0.0, %v1553
        %v1555 = vpop.f32.mrb[0].mxu0
        %1556 = vdwg.mxu0
        %v1557 = vadd.f32 %v1420, %v1495
        %v1558 = vadd.f32 %v1421, %v1498
        %v1559 = vadd.f32 %v1422, %v1503
        %v1560 = vadd.f32 %v1423, %v1506
        %v1561 = vadd.f32 %v1424, %v1511
        %v1562 = vadd.f32 %v1425, %v1514
        %v1563 = vadd.f32 %v1426, %v1519
        %v1564 = vadd.f32 %v1427, %v1522
        %v1565 = vadd.f32 %v1428, %v1527
        %v1566 = vadd.f32 %v1429, %v1530
        %v1567 = vadd.f32 %v1430, %v1535
        %v1568 = vadd.f32 %v1431, %v1538
        %v1569 = vadd.f32 %v1432, %v1543
        %v1570 = vadd.f32 %v1433, %v1546
        %v1571 = vadd.f32 %v1434, %v1551
        %v1572 = vadd.f32 %v1435, %v1554
        %v1574 = vshrl.u32 %v214, 16
        %v1576 = vrot.slane %v1574, 4
        %v1577 = vshll.u32 %v214, 16
        %v1579 = vrot.slane %v1577, 5
        %v1580 = vor.u32 %v1576, %v1579
        %v1581 = vrot.slane %v1580, 4
        %v1583 = vshll.u32 %v215, 16
        %v1585 = vrot.slane %v1583, 5
        %v1586 = vsel %vm222, %v1581, %v1585
        %v1587 = vshrl.u32 %v215, 16
        %v1589 = vrot.slane %v1587, 4
        %v1590 = vor.u32 %v1589, %v1585
        %v1591 = vrot.slane %v1590, 4
        %v1593 = vshll.u32 %v216, 16
        %v1595 = vrot.slane %v1593, 5
        %v1596 = vsel %vm222, %v1591, %v1595
        %v1597 = vshrl.u32 %v216, 16
        %v1599 = vrot.slane %v1597, 4
        %v1600 = vor.u32 %v1599, %v1595
        %v1601 = vrot.slane %v1600, 4
        %v1603 = vshll.u32 %v217, 16
        %v1605 = vrot.slane %v1603, 5
        %v1606 = vsel %vm222, %v1601, %v1605
        %v1607 = vshrl.u32 %v217, 16
        %v1609 = vrot.slane %v1607, 4
        %v1610 = vor.u32 %v1609, %v1605
        %v1611 = vrot.slane %v1610, 4
        %v1613 = vshll.u32 %v218, 16
        %v1615 = vrot.slane %v1613, 5
        %v1616 = vsel %vm222, %v1611, %v1615
        %v1617 = vld [vmem:[%s1 + $0x8] sm:$0xc]
        %v1618 = vunpack.c.l.b16 %v1586
        %v1619 = vunpack.c.l.b16 %v1596
        %v1620 = vunpack.c.l.b16 %v1606
        %v1621 = vunpack.c.l.b16 %v1616
        %v1622 = vpack.c.b16 %v1619, %v1618
        %v1623 = vpack.c.b16 %v1621, %v1620
        %v1625 = vunpack.c.l.b16 %v1617
        %v1626 = vpack.c.b16 %v1625, %v1625
        %v1628 = vshrl.u32 %v1626, 16
        %v1630 = vrot.slane %v1628, 2
        %v1631 = vshll.u32 %v1626, 16
        %v1633 = vrot.slane %v1631, 3
        %v1634 = vor.u32 %v1630, %v1633
        %v1636 = vsel %vm435, %v1622, 0
        %v1639 = vsel %vm435, %v1623, 0
        %v1642 = vand.u32 %v1634, %v463
        %1644 = vmatprep.subr.bf16.mxu0 0
        %1645 = vmatpush1.bf16.msra.mxu0 %v1642
        %1646 = vmatprep.subr.bf16.mxu0 0
        %1647 = vmatpush1.bf16.msra.mxu0 0
        %1648 = vmatprep.subr.bf16.mxu0 0
        %1649 = vmatpush1.bf16.msra.mxu0 0
        %1650 = vmatprep.subr.bf16.mxu0 0
        %1651 = vmatpush1.bf16.msra.mxu0 0
        %1652 = vmatprep.subr.bf16.mxu0 0
        %1653 = vmatpush1.bf16.msra.mxu0 0
        %1654 = vmatprep.subr.bf16.mxu0 0
        %1655 = vmatpush1.bf16.msra.mxu0 0
        %1656 = vmatprep.subr.bf16.mxu0 0
        %1657 = vmatpush1.bf16.msra.mxu0 0
        %1658 = vmatprep.subr.bf16.mxu0 0
        %1659 = vmatpush1.bf16.msra.mxu0 0
        %1660 = vmatprep.subr.bf16.mxu0 0
        %1661 = vmatpush1.bf16.msra.mxu0 0
        %1662 = vmatprep.subr.bf16.mxu0 0
        %1663 = vmatpush1.bf16.msra.mxu0 0
        %1664 = vmatprep.subr.bf16.mxu0 0
        %1665 = vmatpush1.bf16.msra.mxu0 0
        %1666 = vmatprep.subr.bf16.mxu0 0
        %1667 = vmatpush1.bf16.msra.mxu0 0
        %1668 = vmatprep.subr.bf16.mxu0 0
        %1669 = vmatpush1.bf16.msra.mxu0 0
        %1670 = vmatprep.subr.bf16.mxu0 0
        %1671 = vmatpush1.bf16.msra.mxu0 0
        %1672 = vmatprep.subr.bf16.mxu0 0
        %1673 = vmatpush1.bf16.msra.mxu0 0
        %1674 = vmatprep.subr.bf16.mxu0 0
        %1675 = vmatpush1.bf16.msra.mxu0 0
        %1676 = vmatprep.mubr.bf16.mxu0 0
        %1677 = vmatmul.mubr.bf16.gmra.mrb[0].mxu0 %v449
        %v1678 = vpop.f32.mrb[0].mxu0
        %v1679 = vadd.f32 0.0, %v1678
        %v1680 = vpop.f32.mrb[0].mxu0
        %v1681 = vpop.f32.mrb[0].mxu0
        %v1682 = vadd.f32 0.0, %v1681
        %v1683 = vpop.f32.mrb[0].mxu0
        %1684 = vmatprep.mubr.bf16.mxu0 0
        %1685 = vmatmul.mubr.bf16.gmra.mrb[0].mxu0 %v452
        %v1686 = vpop.f32.mrb[0].mxu0
        %v1687 = vadd.f32 0.0, %v1686
        %v1688 = vpop.f32.mrb[0].mxu0
        %v1689 = vpop.f32.mrb[0].mxu0
        %v1690 = vadd.f32 0.0, %v1689
        %v1691 = vpop.f32.mrb[0].mxu0
        %1692 = vmatprep.mubr.bf16.mxu0 0
        %1693 = vmatmul.mubr.bf16.gmra.mrb[0].mxu0 %v455
        %v1694 = vpop.f32.mrb[0].mxu0
        %v1695 = vadd.f32 0.0, %v1694
        %v1696 = vpop.f32.mrb[0].mxu0
        %v1697 = vpop.f32.mrb[0].mxu0
        %v1698 = vadd.f32 0.0, %v1697
        %v1699 = vpop.f32.mrb[0].mxu0
        %1700 = vmatprep.mubr.bf16.mxu0 0
        %1701 = vmatmul.mubr.bf16.gmra.mrb[0].mxu0 %v458
        %v1702 = vpop.f32.mrb[0].mxu0
        %v1703 = vadd.f32 0.0, %v1702
        %v1704 = vpop.f32.mrb[0].mxu0
        %v1705 = vpop.f32.mrb[0].mxu0
        %v1706 = vadd.f32 0.0, %v1705
        %v1707 = vpop.f32.mrb[0].mxu0
        %1708 = vmatprep.mubr.bf16.mxu0 0
        %1709 = vmatmul.mubr.bf16.gmra.mrb[0].mxu0 %v1158
        %v1710 = vpop.f32.mrb[0].mxu0
        %v1711 = vadd.f32 0.0, %v1710
        %v1712 = vpop.f32.mrb[0].mxu0
        %v1713 = vpop.f32.mrb[0].mxu0
        %v1714 = vadd.f32 0.0, %v1713
        %v1715 = vpop.f32.mrb[0].mxu0
        %1716 = vmatprep.mubr.bf16.mxu0 0
        %1717 = vmatmul.mubr.bf16.gmra.mrb[0].mxu0 %v1161
        %v1718 = vpop.f32.mrb[0].mxu0
        %v1719 = vadd.f32 0.0, %v1718
        %v1720 = vpop.f32.mrb[0].mxu0
        %v1721 = vpop.f32.mrb[0].mxu0
        %v1722 = vadd.f32 0.0, %v1721
        %v1723 = vpop.f32.mrb[0].mxu0
        %1724 = vmatprep.mubr.bf16.mxu0 0
        %1725 = vmatmul.mubr.bf16.gmra.mrb[0].mxu0 %v1636
        %v1726 = vpop.f32.mrb[0].mxu0
        %v1727 = vadd.f32 0.0, %v1726
        %v1728 = vpop.f32.mrb[0].mxu0
        %v1729 = vpop.f32.mrb[0].mxu0
        %v1730 = vadd.f32 0.0, %v1729
        %v1731 = vpop.f32.mrb[0].mxu0
        %1732 = vmatprep.mubr.bf16.mxu0 0
        %1733 = vmatmul.mubr.bf16.gmra.mrb[0].mxu0 %v1639
        %v1734 = vpop.f32.mrb[0].mxu0
        %v1735 = vadd.f32 0.0, %v1734
        %v1736 = vpop.f32.mrb[0].mxu0
        %v1737 = vpop.f32.mrb[0].mxu0
        %v1738 = vadd.f32 0.0, %v1737
        %v1739 = vpop.f32.mrb[0].mxu0
        %1740 = vdwg.mxu0
        %v1741 = vadd.f32 %v1557, %v1679
        %v1742 = vadd.f32 %v1558, %v1682
        %v1743 = vadd.f32 %v1559, %v1687
        %v1744 = vadd.f32 %v1560, %v1690
        %v1745 = vadd.f32 %v1561, %v1695
        %v1746 = vadd.f32 %v1562, %v1698
        %v1747 = vadd.f32 %v1563, %v1703
        %v1748 = vadd.f32 %v1564, %v1706
        %v1749 = vadd.f32 %v1565, %v1711
        %v1750 = vadd.f32 %v1566, %v1714
        %v1751 = vadd.f32 %v1567, %v1719
        %v1752 = vadd.f32 %v1568, %v1722
        %v1753 = vadd.f32 %v1569, %v1727
        %v1754 = vadd.f32 %v1570, %v1730
        %v1755 = vadd.f32 %v1571, %v1735
        %v1756 = vadd.f32 %v1572, %v1738
        %v1758 = vrot.slane %v214, 5
        %v1759 = vrot.slane %v1758, 4
        %v1760 = vrot.slane %v215, 5
        %v1761 = vsel %vm734, %v1759, %v1760
        %v1762 = vrot.slane %v1760, 4
        %v1763 = vrot.slane %v216, 5
        %v1764 = vsel %vm734, %v1762, %v1763
        %v1765 = vrot.slane %v1763, 4
        %v1766 = vrot.slane %v217, 5
        %v1767 = vsel %vm734, %v1765, %v1766
        %v1768 = vrot.slane %v1766, 4
        %v1769 = vrot.slane %v218, 5
        %v1770 = vsel %vm734, %v1768, %v1769
        %v1771 = vld [vmem:[%s1 + $0xc] sm:$0x3]
        %v1772 = vunpack.c.l.b16 %v1761
        %v1773 = vunpack.c.l.b16 %v1764
        %v1774 = vunpack.c.l.b16 %v1767
        %v1775 = vunpack.c.l.b16 %v1770
        %v1776 = vpack.c.b16 %v1773, %v1772
        %v1777 = vpack.c.b16 %v1775, %v1774
        %v1779 = vsel %vm435, %v1776, 0
        %v1782 = vsel %vm435, %v1777, 0
        %v1785 = vand.u32 %v1771, %v463
        %1787 = vmatprep.subr.bf16.mxu0 0
        %1788 = vmatpush1.bf16.msra.mxu0 %v1785
        %1789 = vmatprep.subr.bf16.mxu0 0
        %1790 = vmatpush1.bf16.msra.mxu0 0
        %1791 = vmatprep.subr.bf16.mxu0 0
        %1792 = vmatpush1.bf16.msra.mxu0 0
        %1793 = vmatprep.subr.bf16.mxu0 0
        %1794 = vmatpush1.bf16.msra.mxu0 0
        %1795 = vmatprep.subr.bf16.mxu0 0
        %1796 = vmatpush1.bf16.msra.mxu0 0
        %1797 = vmatprep.subr.bf16.mxu0 0
        %1798 = vmatpush1.bf16.msra.mxu0 0
        %1799 = vmatprep.subr.bf16.mxu0 0
        %1800 = vmatpush1.bf16.msra.mxu0 0
        %1801 = vmatprep.subr.bf16.mxu0 0
        %1802 = vmatpush1.bf16.msra.mxu0 0
        %1803 = vmatprep.subr.bf16.mxu0 0
        %1804 = vmatpush1.bf16.msra.mxu0 0
        %1805 = vmatprep.subr.bf16.mxu0 0
        %1806 = vmatpush1.bf16.msra.mxu0 0
        %1807 = vmatprep.subr.bf16.mxu0 0
        %1808 = vmatpush1.bf16.msra.mxu0 0
        %1809 = vmatprep.subr.bf16.mxu0 0
        %1810 = vmatpush1.bf16.msra.mxu0 0
        %1811 = vmatprep.subr.bf16.mxu0 0
        %1812 = vmatpush1.bf16.msra.mxu0 0
        %1813 = vmatprep.subr.bf16.mxu0 0
        %1814 = vmatpush1.bf16.msra.mxu0 0
        %1815 = vmatprep.subr.bf16.mxu0 0
        %1816 = vmatpush1.bf16.msra.mxu0 0
        %1817 = vmatprep.subr.bf16.mxu0 0
        %1818 = vmatpush1.bf16.msra.mxu0 0
        %1819 = vmatprep.mubr.bf16.mxu0 0
        %1820 = vmatmul.mubr.bf16.gmra.mrb[0].mxu0 %v832
        %v1821 = vpop.f32.mrb[0].mxu0
        %v1822 = vadd.f32 0.0, %v1821
        %v1823 = vpop.f32.mrb[0].mxu0
        %v1824 = vpop.f32.mrb[0].mxu0
        %v1825 = vadd.f32 0.0, %v1824
        %v1826 = vpop.f32.mrb[0].mxu0
        %1827 = vmatprep.mubr.bf16.mxu0 0
        %1828 = vmatmul.mubr.bf16.gmra.mrb[0].mxu0 %v835
        %v1829 = vpop.f32.mrb[0].mxu0
        %v1830 = vadd.f32 0.0, %v1829
        %v1831 = vpop.f32.mrb[0].mxu0
        %v1832 = vpop.f32.mrb[0].mxu0
        %v1833 = vadd.f32 0.0, %v1832
        %v1834 = vpop.f32.mrb[0].mxu0
        %1835 = vmatprep.mubr.bf16.mxu0 0
        %1836 = vmatmul.mubr.bf16.gmra.mrb[0].mxu0 %v838
        %v1837 = vpop.f32.mrb[0].mxu0
        %v1838 = vadd.f32 0.0, %v1837
        %v1839 = vpop.f32.mrb[0].mxu0
        %v1840 = vpop.f32.mrb[0].mxu0
        %v1841 = vadd.f32 0.0, %v1840
        %v1842 = vpop.f32.mrb[0].mxu0
        %1843 = vmatprep.mubr.bf16.mxu0 0
        %1844 = vmatmul.mubr.bf16.gmra.mrb[0].mxu0 %v841
        %v1845 = vpop.f32.mrb[0].mxu0
        %v1846 = vadd.f32 0.0, %v1845
        %v1847 = vpop.f32.mrb[0].mxu0
        %v1848 = vpop.f32.mrb[0].mxu0
        %v1849 = vadd.f32 0.0, %v1848
        %v1850 = vpop.f32.mrb[0].mxu0
        %1851 = vmatprep.mubr.bf16.mxu0 0
        %1852 = vmatmul.mubr.bf16.gmra.mrb[0].mxu0 %v1315
        %v1853 = vpop.f32.mrb[0].mxu0
        %v1854 = vadd.f32 0.0, %v1853
        %v1855 = vpop.f32.mrb[0].mxu0
        %v1856 = vpop.f32.mrb[0].mxu0
        %v1857 = vadd.f32 0.0, %v1856
        %v1858 = vpop.f32.mrb[0].mxu0
        %1859 = vmatprep.mubr.bf16.mxu0 0
        %1860 = vmatmul.mubr.bf16.gmra.mrb[0].mxu0 %v1318
        %v1861 = vpop.f32.mrb[0].mxu0
        %v1862 = vadd.f32 0.0, %v1861
        %v1863 = vpop.f32.mrb[0].mxu0
        %v1864 = vpop.f32.mrb[0].mxu0
        %v1865 = vadd.f32 0.0, %v1864
        %v1866 = vpop.f32.mrb[0].mxu0
        %1867 = vmatprep.mubr.bf16.mxu0 0
        %1868 = vmatmul.mubr.bf16.gmra.mrb[0].mxu0 %v1779
        %v1869 = vpop.f32.mrb[0].mxu0
        %v1870 = vadd.f32 0.0, %v1869
        %v1871 = vpop.f32.mrb[0].mxu0
        %v1872 = vpop.f32.mrb[0].mxu0
        %v1873 = vadd.f32 0.0, %v1872
        %v1874 = vpop.f32.mrb[0].mxu0
        %1875 = vmatprep.mubr.bf16.mxu0 0
        %1876 = vmatmul.mubr.bf16.gmra.mrb[0].mxu0 %v1782
        %v1877 = vpop.f32.mrb[0].mxu0
        %v1878 = vadd.f32 0.0, %v1877
        %v1879 = vpop.f32.mrb[0].mxu0
        %v1880 = vpop.f32.mrb[0].mxu0
        %v1881 = vadd.f32 0.0, %v1880
        %v1882 = vpop.f32.mrb[0].mxu0
        %1883 = vdwg.mxu0
        %v1884 = vadd.f32 %v1741, %v1822
        %v1885 = vadd.f32 %v1742, %v1825
        %v1886 = vadd.f32 %v1743, %v1830
        %v1887 = vadd.f32 %v1744, %v1833
        %v1888 = vadd.f32 %v1745, %v1838
        %v1889 = vadd.f32 %v1746, %v1841
        %v1890 = vadd.f32 %v1747, %v1846
        %v1891 = vadd.f32 %v1748, %v1849
        %v1892 = vadd.f32 %v1749, %v1854
        %v1893 = vadd.f32 %v1750, %v1857
        %v1894 = vadd.f32 %v1751, %v1862
        %v1895 = vadd.f32 %v1752, %v1865
        %v1896 = vadd.f32 %v1753, %v1870
        %v1897 = vadd.f32 %v1754, %v1873
        %v1898 = vadd.f32 %v1755, %v1878
        %v1899 = vadd.f32 %v1756, %v1881
        %v1900 = vld [vmem:[%s2] sm:$0x1]
        %v1902 = vlaneseq
        %v1903 = vshrl.u32 %v1902, 7
        %v1904 = vsub.s32 0, %v1903
        %v1905 = vrot.slane %v1900, %v1904
        %v1907 = vadd.f32 %v1884, %v1905
        %v1908 = vadd.f32 %v1885, %v1905
        %v1909 = vadd.f32 %v1886, %v1905
        %v1910 = vadd.f32 %v1887, %v1905
        %v1911 = vadd.f32 %v1888, %v1905
        %v1912 = vadd.f32 %v1889, %v1905
        %v1913 = vadd.f32 %v1890, %v1905
        %v1914 = vadd.f32 %v1891, %v1905
        %v1915 = vadd.f32 %v1892, %v1905
        %v1916 = vadd.f32 %v1893, %v1905
        %v1917 = vadd.f32 %v1894, %v1905
        %v1918 = vadd.f32 %v1895, %v1905
        %v1919 = vadd.f32 %v1896, %v1905
        %v1920 = vadd.f32 %v1897, %v1905
        %v1921 = vadd.f32 %v1898, %v1905
        %v1922 = vadd.f32 %v1899, %v1905
        %v1923 = vmax.f32 %v1907, 0.0
        %v1924 = vmax.f32 %v1908, 0.0
        %v1925 = vmax.f32 %v1909, 0.0
        %v1926 = vmax.f32 %v1910, 0.0
        %v1927 = vmax.f32 %v1911, 0.0
        %v1928 = vmax.f32 %v1912, 0.0
        %v1929 = vmax.f32 %v1913, 0.0
        %v1930 = vmax.f32 %v1914, 0.0
        %v1931 = vmax.f32 %v1915, 0.0
        %v1932 = vmax.f32 %v1916, 0.0
        %v1933 = vmax.f32 %v1917, 0.0
        %v1934 = vmax.f32 %v1918, 0.0
        %v1935 = vmax.f32 %v1919, 0.0
        %v1936 = vmax.f32 %v1920, 0.0
        %v1937 = vmax.f32 %v1921, 0.0
        %v1938 = vmax.f32 %v1922, 0.0
        %v1939 = vpack.c.bf16 %v1924, %v1923
        %v1940 = vpack.c.bf16 %v1926, %v1925
        %v1941 = vpack.c.bf16 %v1928, %v1927
        %v1942 = vpack.c.bf16 %v1930, %v1929
        %v1943 = vpack.c.bf16 %v1932, %v1931
        %v1944 = vpack.c.bf16 %v1934, %v1933
        %v1945 = vpack.c.bf16 %v1936, %v1935
        %v1946 = vpack.c.bf16 %v1938, %v1937
        %v1955 = vunpack.c.l.b16 %v1939
        %v1956 = vunpack.c.h.b16 %v1939
        %v1957 = vunpack.c.l.b16 %v1940
        %v1958 = vunpack.c.h.b16 %v1940
        %v1959 = vunpack.c.l.b16 %v1941
        %v1960 = vunpack.c.h.b16 %v1941
        %v1961 = vunpack.c.l.b16 %v1942
        %v1962 = vunpack.c.h.b16 %v1942
        %v1963 = vunpack.c.l.b16 %v1943
        %v1964 = vunpack.c.h.b16 %v1943
        %v1965 = vunpack.c.l.b16 %v1944
        %v1966 = vunpack.c.h.b16 %v1944
        %v1967 = vunpack.c.l.b16 %v1945
        %v1968 = vunpack.c.h.b16 %v1945
        %v1969 = vunpack.c.l.b16 %v1946
        %v1970 = vunpack.c.h.b16 %v1946
        %v1971 = vpack.c.b16 %v1955, %v1955
        %v1972 = vpack.c.b16 %v1956, %v1956
        %v1973 = vpack.c.b16 %v1957, %v1957
        %v1974 = vpack.c.b16 %v1958, %v1958
        %v1975 = vpack.c.b16 %v1959, %v1959
        %v1976 = vpack.c.b16 %v1960, %v1960
        %v1977 = vpack.c.b16 %v1961, %v1961
        %v1978 = vpack.c.b16 %v1962, %v1962
        %v1979 = vpack.c.b16 %v1963, %v1963
        %v1980 = vpack.c.b16 %v1964, %v1964
        %v1981 = vpack.c.b16 %v1965, %v1965
        %v1982 = vpack.c.b16 %v1966, %v1966
        %v1983 = vpack.c.b16 %v1967, %v1967
        %v1984 = vpack.c.b16 %v1968, %v1968
        %v1985 = vpack.c.b16 %v1969, %v1969
        %v1986 = vpack.c.b16 %v1970, %v1970
        %vm2003 = vcmask 519168
        %2004 = vst.msk [vmem:[%s177] sm:$0xf] %vm2003, %v1971
        %2005 = vst.msk [vmem:[%s177 + $0x4] sm:$0xf] %vm2003, %v1972
        %2006 = vst.msk [vmem:[%s177 + $0x8] sm:$0xf] %vm2003, %v1973
        %2007 = vst.msk [vmem:[%s177 + $0xc] sm:$0xf] %vm2003, %v1974
        %2008 = vst.msk [vmem:[%s177 + $0x10] sm:$0xf] %vm2003, %v1975
        %2009 = vst.msk [vmem:[%s177 + $0x14] sm:$0xf] %vm2003, %v1976
        %2010 = vst.msk [vmem:[%s177 + $0x18] sm:$0xf] %vm2003, %v1977
        %2011 = vst.msk [vmem:[%s177 + $0x1c] sm:$0xf] %vm2003, %v1978
        %2012 = vst.msk [vmem:[%s177 + $0x20] sm:$0xf] %vm2003, %v1979
        %2013 = vst.msk [vmem:[%s177 + $0x24] sm:$0xf] %vm2003, %v1980
        %2014 = vst.msk [vmem:[%s177 + $0x28] sm:$0xf] %vm2003, %v1981
        %2015 = vst.msk [vmem:[%s177 + $0x2c] sm:$0xf] %vm2003, %v1982
        %2016 = vst.msk [vmem:[%s177 + $0x30] sm:$0xf] %vm2003, %v1983
        %2017 = vst.msk [vmem:[%s177 + $0x34] sm:$0xf] %vm2003, %v1984
        %2018 = vst.msk [vmem:[%s177 + $0x38] sm:$0xf] %vm2003, %v1985
        %2019 = vst.msk [vmem:[%s177 + $0x3c] sm:$0xf] %vm2003, %v1986
        %s2020 = sand.u32 %s107, 1
        %s2021 = scalar_lea.sflag [#allocation3], %s2020
        %s2022 = sand.u32 %s107, 1
        %s2023 = smul.addr %s2022, 64
        %s2024 = scalar_lea.vmem [#allocation2], %s2023
        // Predicated region
        $region33: #{tpu_custom_call.1} parent=31 // pred_check
          %p2025 = pneg %p117
        $region34: #{tpu_custom_call.1} parent=31 // pred_check_branch
          %2027 = sbr.rel (%p2025) target = $region36
        $region35: #{tpu_custom_call.1} parent=31 // pred_region
          %s2028 = smul.u32 4, %s22
          %s2030 = ssub.s32 1024, 1024
          %2031 = vsyncadd %s2021, %s2030
          %s2032 = smul.addr %s2028, 4
          %s2033 = smul.addr %s21, 128
          %s2034 = sadd.s32 %s2032, %s2033
          %s2035 = smul.addr %s2034, 64
          %s2036 = scalar_lea.hbm %s3, %s2035
          %s2037 = sshll.u32 %s2024, 4
          %s2038 = int_to_ptr.vmem [resolvable:$true] %s2037
          %2043 = dma.vmem_to_hbm [thread:$0]  %s2038, 1024, %s2036, %s2021, 64, 64, 4
        $region36: #{tpu_custom_call.1} parent=31 // pred_fallthru
          _
      $region32: #{tpu_custom_call.1} parent=5 // pred_fallthru
        _
      %p2044 = scmp.le.s32.totalorder 2, %s12
      // Predicated region
      $region37: #{tpu_custom_call.1} parent=5 // pred_check
        %p2045 = pneg %p2044
      $region38: #{tpu_custom_call.1} parent=5 // pred_check_branch
        %2047 = sbr.rel (%p2045) target = $region40
      $region39: #{tpu_custom_call.1} parent=5 // pred_region
        %s2048 = ssub.s32 %s12, 2
        // Predicated region
        $region41: #{tpu_custom_call.1} parent=39 // pred_check
          %p2049 = pneg %p123
        $region42: #{tpu_custom_call.1} parent=39 // pred_check_branch
          %2051 = sbr.rel (%p2049) target = $region44
        $region43: #{tpu_custom_call.1} parent=39 // pred_region
          %s2052 = sand.u32 %s108, 1
          %s2053 = scalar_lea.sflag [#allocation3], %s2052
          %s2054 = sand.u32 %s108, 1
          %s2055 = smul.addr %s2054, 64
          %s2056 = scalar_lea.vmem [#allocation2], %s2055
          %2057 = dma.done %s2053, 1024
        $region44: #{tpu_custom_call.1} parent=39 // pred_fallthru
          _
      $region40: #{tpu_custom_call.1} parent=5 // pred_fallthru
        _
    $region6: #{tpu_custom_call.1} parent=1 // loop_footer
      %s16 = sadd.s32 1, %s12
    $region7: #{tpu_custom_call.1} parent=1 // loop_footer_branch
      %11 = sbr.rel target = $region3
    $region8: #{tpu_custom_call.1} parent=1 // loop_exit
      _
    %2058 = vsyncpa [#allocation3], 1
    %s2059 = scalar_lea.sflag [#allocation3], 1
    %2060 = vsyncpa %s2059, 1

</llo_original>
